<compile_context>
chip_gen: v5e
topology: v5e:2x2
jax: 0.10.0
libtpu: 0.0.40
codegen_flags: <defaults>
</compile_context>

<pallas_src>
import jax
import jax.numpy as jnp
from jax import lax
from jax.experimental import pallas as pl
from jax.experimental.pallas import tpu as pltpu

LANE = 128
SUBLANE = 8


def _round_up(x, m):
    return ((x + m - 1) // m) * m


def _pad2(a, rows, cols):
    return jnp.pad(a, ((0, rows - a.shape[0]), (0, cols - a.shape[1])))


def _vmem_capacity_bytes():
    """Generation-aware VMEM capacity; conservative fallback if the query fails."""
    try:
        info = pltpu.get_tpu_info()
        cap = getattr(info, "vmem_capacity_bytes", None)
        if cap:
            return int(cap)
    except Exception:
        pass
    return 64 * 1024 * 1024  # conservative (v7x per-TensorCore VMEM)


def _make_wae_kernel(n_enc, n_dec, topic_valid, topic_padded):
    """Fused kernel: encoder MLP -> masked softmax -> decoder MLP.

    Ref ordering:  x, (W_e0, b_e0, ..., W_e{n-1}, b_e{n-1}),
                      (W_d0, b_d0, ..., W_d{m-1}, b_d{m-1}),
                   x_reconst_out, theta_out
    Weights are (in[_padded], out_padded); biases are (1, out_padded) f32.
    """

    def linear(h, w_ref, b_ref):
        w = w_ref[...]
        b = b_ref[...]                       # (1, out) f32, added after f32 accumulation
        # If weights were pre-cast to bf16 (v6e/v7x path), feed bf16 operands to the
        # MXU while accumulating in f32; for f32 weights the astype is a no-op.
        out = jnp.dot(h.astype(w.dtype), w, preferred_element_type=jnp.float32)
        return out + b

    def kernel(*refs):
        x_ref = refs[0]
        enc_refs = refs[1: 1 + 2 * n_enc]
        dec_refs = refs[1 + 2 * n_enc: 1 + 2 * (n_enc + n_dec)]
        xr_ref, theta_ref = refs[-2], refs[-1]

        # ---------------- encoder ----------------
        h = x_ref[...]
        for i in range(n_enc):
            h = linear(h, enc_refs[2 * i], enc_refs[2 * i + 1])
            if i < n_enc - 1:
                h = jnp.maximum(h, 0.0)      # ReLU (dropout == identity in eval mode)

        # ---- softmax over dim=1, masked to the valid (unpadded) topic lanes ----
        if topic_valid < topic_padded:
            col = lax.broadcasted_iota(jnp.int32, h.shape, 1)
            h = jnp.where(col < topic_valid, h, -jnp.inf)
        m = jnp.max(h, axis=1, keepdims=True)
        e = jnp.exp(h - m)                   # padded lanes -> exp(-inf) = 0
        denom = jnp.sum(e, axis=1, keepdims=True)
        theta = e * pl.reciprocal(denom, approx=False)   # exact: rows sum to 1 at f32
        theta_ref[...] = theta.astype(theta_ref.dtype)

        # ---------------- decoder ----------------
        h = theta                            # padded theta lanes are exactly 0
        for i in range(n_dec):
            h = linear(h, dec_refs[2 * i], dec_refs[2 * i + 1])
            if i < n_dec - 1:
                h = jnp.maximum(h, 0.0)
        xr_ref[...] = h.astype(xr_ref.dtype)

    return kernel


def prepare_wae_params(enc_params, dec_params, *, use_bf16_matmul=False):
    """One-time parameter prep (hoisted out of the forward path).

    enc_params / dec_params: lists of (W, b) with W shaped (in, out) (PyTorch weight.T)
    and b shaped (out,).  Pads feature dims to 128 lanes (except the first layer's row
    count, so x never needs lane padding) and optionally pre-casts weights to bf16
    (MXU-native operands on v6e/v7x; accumulation stays f32 in-kernel).
    """
    wdtype = jnp.bfloat16 if use_bf16_matmul else jnp.float32
    n_enc, n_dec = len(enc_params), len(dec_params)
    in_dim = enc_params[0][0].shape[0]
    topic_dim = enc_params[-1][0].shape[1]
    out_dim = dec_params[-1][0].shape[1]

    params = []
    widths = []
    for li, (w, b) in enumerate(list(enc_params) + list(dec_params)):
        wi, wo = w.shape
        wi_p = wi if li == 0 else _round_up(wi, LANE)   # first layer rows stay unpadded
        wo_p = _round_up(wo, LANE)
        params.append(jax.device_put(
            _pad2(jnp.asarray(w, jnp.float32), wi_p, wo_p).astype(wdtype)))
        params.append(jax.device_put(
            jnp.pad(jnp.asarray(b, jnp.float32).reshape(1, -1), ((0, 0), (0, wo_p - wo)))))
        widths.append(wo_p)

    return dict(
        params=tuple(params), n_enc=n_enc, n_dec=n_dec,
        in_dim=in_dim, topic_dim=topic_dim, out_dim=out_dim,
        topic_p=_round_up(topic_dim, LANE), out_p=_round_up(out_dim, LANE),
        layer_out_widths=tuple(widths),
    )


def wae_forward(x, prepared, *, batch_tile=512):
    """Fused WAE forward on TPU via one pallas_call using pre-padded params."""
    n_enc, n_dec = prepared["n_enc"], prepared["n_dec"]
    params = prepared["params"]
    in_dim, topic_dim, out_dim = prepared["in_dim"], prepared["topic_dim"], prepared["out_dim"]
    topic_p, out_p = prepared["topic_p"], prepared["out_p"]
    widths = prepared["layer_out_widths"]

    batch, x_in = x.shape
    assert x_in == in_dim, f"x feature dim {x_in} != model input dim {in_dim}"
    if x.dtype != jnp.float32:
        x = x.astype(jnp.float32)

    # ---- generation-aware VMEM budget -> batch-tile clamp + explicit vmem limit ----
    cap = _vmem_capacity_bytes()                         # 64 MiB (v7x) / 128 MiB (v5e, v6e)
    weight_bytes = sum(int(a.size) * a.dtype.itemsize for a in params)
    resident = 2 * weight_bytes                          # default double-buffering of constant blocks
    # TODO(synk): pipeline_mode=pl.Buffered(1) on the constant weight BlockSpecs would
    #             halve `resident`; kept at the default here for lowering robustness
    #             (the VMEM budget below already assumes the 2x).
    bytes_per_row = 4 * (2 * (in_dim + out_p + topic_p) + sum(widths))  # tiles + f32 temps
    budget = int(cap * 0.75)
    tb_cap = max(SUBLANE, ((budget - resident) // max(bytes_per_row, 1)) // SUBLANE * SUBLANE)

    tb = min(batch_tile, tb_cap, _round_up(batch, SUBLANE))
    tb = max(SUBLANE, (tb // SUBLANE) * SUBLANE)
    if batch > tb:
        # Large batch: keep >= 4 grid steps so each megacore TC sees >= 2 pipelined steps.
        tb = min(tb, max(SUBLANE, _round_up(pl.cdiv(batch, 4), SUBLANE)))
    padded_batch = _round_up(batch, tb)
    n_steps = padded_batch // tb

    if padded_batch != batch:
        x = jnp.pad(x, ((0, padded_batch - batch), (0, 0)))

    vmem_need = resident + tb * bytes_per_row + (1 << 20)
    vmem_limit = int(min(0.9 * cap, max(2 * vmem_need, 32 << 20)))

    # ----- specs: x / outputs tiled over batch, weights & biases VMEM-resident -----
    in_specs = [pl.BlockSpec((tb, in_dim), lambda i: (i, 0))]     # x unpadded in lanes
    for a in params:
        in_specs.append(pl.BlockSpec(a.shape, lambda i: (0, 0)))  # constant block -> DMA'd once

    out_specs = (
        pl.BlockSpec((tb, out_p), lambda i: (i, 0)),
        pl.BlockSpec((tb, topic_p), lambda i: (i, 0)),
    )
    out_shape = (
        jax.ShapeDtypeStruct((padded_batch, out_p), jnp.float32),
        jax.ShapeDtypeStruct((padded_batch, topic_p), jnp.float32),
    )

    # ----- advisory cost hint so XLA schedules the tiny fused call tightly -----
    flops = 2 * padded_batch * sum(
        params[2 * i].shape[0] * params[2 * i].shape[1] for i in range(n_enc + n_dec))
    bytes_accessed = (weight_bytes + int(x.size) * 4
                      + padded_batch * (out_p + topic_p) * 4)
    cost = pl.CostEstimate(flops=int(flops),
                           transcendentals=int(padded_batch * (topic_p + 1)),
                           bytes_accessed=int(bytes_accessed))

    kernel = _make_wae_kernel(n_enc, n_dec, topic_dim, topic_p)
    fn = pl.pallas_call(
        kernel,
        grid=(n_steps,),
        in_specs=in_specs,
        out_specs=out_specs,
        out_shape=out_shape,
        compiler_params=pltpu.CompilerParams(
            dimension_semantics=("parallel",),   # batch tiles are independent -> megacore
            vmem_limit_bytes=vmem_limit,
        ),
        cost_estimate=cost,
    )
    xr_p, theta_p = fn(x, *params)
    return xr_p[:batch, :out_dim], theta_p[:batch, :topic_dim]


def _init_linear(key, in_dim, out_dim):
    """Deterministic init mimicking PyTorch Linear: U(-1/sqrt(in), 1/sqrt(in)).
    Weight is returned already transposed to (in, out)."""
    kw, kb = jax.random.split(key)
    bound = 1.0 / jnp.sqrt(jnp.float32(in_dim))
    w = jax.random.uniform(kw, (in_dim, out_dim), jnp.float32, -bound, bound)
    b = jax.random.uniform(kb, (out_dim,), jnp.float32, -bound, bound)
    return w, b


def _reference_forward(x, enc_params, dec_params):
    """Pure-JAX reference of the same eval-mode forward pass."""
    h = x
    for i, (w, b) in enumerate(enc_params):
        h = h @ w + b
        if i < len(enc_params) - 1:
            h = jnp.maximum(h, 0.0)
    theta = jax.nn.softmax(h, axis=1)
    h = theta
    for i, (w, b) in enumerate(dec_params):
        h = h @ w + b
        if i < len(dec_params) - 1:
            h = jnp.maximum(h, 0.0)
    return h, theta


if __name__ == "__main__":
    # Shapes consistent with the module:
    #   encode_dims = [32, 64, 16]  (vocab=32 -> hidden=64 -> num_topic=16)
    #   decode_dims = [16, 64, 32]
    encode_dims = [32, 64, 16]
    decode_dims = [16, 64, 32]
    batch = 256

    key = jax.random.PRNGKey(0)
    keys = jax.random.split(key, 1 + (len(encode_dims) - 1) + (len(decode_dims) - 1))
    x = jax.random.uniform(keys[0], (batch, encode_dims[0]), jnp.float32)

    enc_params = [_init_linear(keys[1 + i], encode_dims[i], encode_dims[i + 1])
                  for i in range(len(encode_dims) - 1)]
    off = 1 + len(encode_dims) - 1
    dec_params = [_init_linear(keys[off + i], decode_dims[i], decode_dims[i + 1])
                  for i in range(len(decode_dims) - 1)]

    xr_ref, th_ref = _reference_forward(x, enc_params, dec_params)

    # ---- f32 path (numerical-parity default) ----
    prepared = prepare_wae_params(enc_params, dec_params, use_bf16_matmul=False)
    x_reconst, theta = wae_forward(x, prepared)
    jax.block_until_ready((x_reconst, theta))

    assert x_reconst.shape == (batch, decode_dims[-1])
    assert theta.shape == (batch, encode_dims[-1])
    assert jnp.allclose(theta, th_ref, atol=2e-3, rtol=2e-3)
    assert jnp.allclose(x_reconst, xr_ref, atol=2e-3, rtol=2e-3)
    # Exact (approx=False) softmax reciprocal -> rows sum to 1 at f32 precision.
    assert jnp.allclose(jnp.sum(theta, axis=1), jnp.ones((batch,)), atol=1e-5)

    # ---- bf16-weight path (MXU-native operands on v6e/v7x; f32 accumulation) ----
    prepared_bf16 = prepare_wae_params(enc_params, dec_params, use_bf16_matmul=True)
    xr_b, th_b = wae_forward(x, prepared_bf16)
    jax.block_until_ready((xr_b, th_b))
    assert jnp.allclose(th_b, th_ref, atol=3e-2, rtol=3e-2)
    assert jnp.allclose(xr_b, xr_ref, atol=3e-2, rtol=3e-2)

    print("KERNEL_OK")
</pallas_src>

<mosaic_0001>
module attributes {stable_mosaic.version = 11 : i64} {
  func.func @kernel(%arg0: i32, %arg1: memref<256x32xf32, #tpu.memory_space<vmem>>, %arg2: memref<32x128xf32, #tpu.memory_space<vmem>>, %arg3: memref<1x128xf32, #tpu.memory_space<vmem>>, %arg4: memref<128x128xf32, #tpu.memory_space<vmem>>, %arg5: memref<1x128xf32, #tpu.memory_space<vmem>>, %arg6: memref<128x128xf32, #tpu.memory_space<vmem>>, %arg7: memref<1x128xf32, #tpu.memory_space<vmem>>, %arg8: memref<128x128xf32, #tpu.memory_space<vmem>>, %arg9: memref<1x128xf32, #tpu.memory_space<vmem>>, %arg10: memref<256x128xf32, #tpu.memory_space<vmem>>, %arg11: memref<256x128xf32, #tpu.memory_space<vmem>>) attributes {dimension_semantics = [#tpu.dimension_semantics<parallel>], iteration_bounds = array<i64: 1>, scalar_prefetch = 0 : i64, scratch_operands = 0 : i64, tpu.core_type = #tpu.core_type<tc>, window_params = [{transform_indices = @transform_0, window_bounds = array<i64: 256, 32>}, {pipeline_mode = #tpu.pipeline_mode<synchronous>, transform_indices = @transform_1, window_bounds = array<i64: 32, 128>}, {pipeline_mode = #tpu.pipeline_mode<synchronous>, transform_indices = @transform_2, window_bounds = array<i64: 1, 128>}, {pipeline_mode = #tpu.pipeline_mode<synchronous>, transform_indices = @transform_3, window_bounds = array<i64: 128, 128>}, {pipeline_mode = #tpu.pipeline_mode<synchronous>, transform_indices = @transform_4, window_bounds = array<i64: 1, 128>}, {pipeline_mode = #tpu.pipeline_mode<synchronous>, transform_indices = @transform_5, window_bounds = array<i64: 128, 128>}, {pipeline_mode = #tpu.pipeline_mode<synchronous>, transform_indices = @transform_6, window_bounds = array<i64: 1, 128>}, {pipeline_mode = #tpu.pipeline_mode<synchronous>, transform_indices = @transform_7, window_bounds = array<i64: 128, 128>}, {pipeline_mode = #tpu.pipeline_mode<synchronous>, transform_indices = @transform_8, window_bounds = array<i64: 1, 128>}, {transform_indices = @transform_9, window_bounds = array<i64: 256, 128>}, {transform_indices = @transform_10, window_bounds = array<i64: 256, 128>}]} {
    %c0 = arith.constant 0 : index
    %c0_0 = arith.constant 0 : index
    %0 = vector.load %arg1[%c0, %c0_0] : memref<256x32xf32, #tpu.memory_space<vmem>>, vector<256x32xf32>
    %c0_1 = arith.constant 0 : index
    %c0_2 = arith.constant 0 : index
    %1 = vector.load %arg2[%c0_1, %c0_2] : memref<32x128xf32, #tpu.memory_space<vmem>>, vector<32x128xf32>
    %c0_3 = arith.constant 0 : index
    %c0_4 = arith.constant 0 : index
    %2 = vector.load %arg3[%c0_3, %c0_4] : memref<1x128xf32, #tpu.memory_space<vmem>>, vector<1x128xf32>
    %cst = arith.constant dense<0.000000e+00> : vector<256x128xf32>
    %3 = tpu.matmul %0, %1, %cst {dimension_numbers = #tpu.dot_dimension_numbers<[1], [0], [0], [1], [0, 0, 1, 1], [], []>} : vector<256x32xf32>, vector<32x128xf32>, vector<256x128xf32> -> vector<256x128xf32>
    %4 = vector.broadcast %2 : vector<1x128xf32> to vector<256x128xf32>
    %5 = arith.addf %3, %4 : vector<256x128xf32>
    %cst_5 = arith.constant 0.000000e+00 : f32
    %6 = vector.broadcast %cst_5 : f32 to vector<256x128xf32>
    %7 = arith.maximumf %5, %6 : vector<256x128xf32>
    %c0_6 = arith.constant 0 : index
    %c0_7 = arith.constant 0 : index
    %8 = vector.load %arg4[%c0_6, %c0_7] : memref<128x128xf32, #tpu.memory_space<vmem>>, vector<128x128xf32>
    %c0_8 = arith.constant 0 : index
    %c0_9 = arith.constant 0 : index
    %9 = vector.load %arg5[%c0_8, %c0_9] : memref<1x128xf32, #tpu.memory_space<vmem>>, vector<1x128xf32>
    %cst_10 = arith.constant dense<0.000000e+00> : vector<256x128xf32>
    %10 = tpu.matmul %7, %8, %cst_10 {dimension_numbers = #tpu.dot_dimension_numbers<[1], [0], [0], [1], [0, 0, 1, 1], [], []>} : vector<256x128xf32>, vector<128x128xf32>, vector<256x128xf32> -> vector<256x128xf32>
    %11 = vector.broadcast %9 : vector<1x128xf32> to vector<256x128xf32>
    %12 = arith.addf %10, %11 : vector<256x128xf32>
    %13 = tpu.iota {dimensions = array<i32: 1>} : vector<256x128xi32>
    %c16_i32 = arith.constant 16 : i32
    %14 = vector.broadcast %c16_i32 : i32 to vector<256x128xi32>
    %15 = arith.cmpi slt, %13, %14 : vector<256x128xi32>
    %cst_11 = arith.constant 0xFF800000 : f32
    %16 = vector.broadcast %cst_11 : f32 to vector<256x128xf32>
    %17 = arith.select %15, %12, %16 : vector<256x128xi1>, vector<256x128xf32>
    %cst_12 = arith.constant dense<0xFF800000> : vector<256xf32>
    %18 = vector.multi_reduction <maximumf>, %17, %cst_12 [1] : vector<256x128xf32> to vector<256xf32>
    %19 = vector.shape_cast %18 : vector<256xf32> to vector<256x1xf32>
    %20 = vector.broadcast %19 : vector<256x1xf32> to vector<256x128xf32>
    %21 = arith.subf %17, %20 : vector<256x128xf32>
    %22 = math.exp %21 : vector<256x128xf32>
    %cst_13 = arith.constant dense<0.000000e+00> : vector<256xf32>
    %23 = vector.multi_reduction <add>, %22, %cst_13 [1] : vector<256x128xf32> to vector<256xf32>
    %24 = vector.shape_cast %23 : vector<256xf32> to vector<256x1xf32>
    %25 = tpu.reciprocal %24 : vector<256x1xf32> -> vector<256x1xf32>
    %26 = vector.broadcast %25 : vector<256x1xf32> to vector<256x128xf32>
    %27 = arith.mulf %22, %26 : vector<256x128xf32>
    %c0_14 = arith.constant 0 : index
    %c0_15 = arith.constant 0 : index
    %28 = vector.load %arg11[%c0_14, %c0_15] : memref<256x128xf32, #tpu.memory_space<vmem>>, vector<256x128xf32>
    tpu.vector_store %arg11[%c0_14, %c0_15], %27 {strides = array<i32>} : memref<256x128xf32, #tpu.memory_space<vmem>>, vector<256x128xf32>,
    %c0_16 = arith.constant 0 : index
    %c0_17 = arith.constant 0 : index
    %29 = vector.load %arg6[%c0_16, %c0_17] : memref<128x128xf32, #tpu.memory_space<vmem>>, vector<128x128xf32>
    %c0_18 = arith.constant 0 : index
    %c0_19 = arith.constant 0 : index
    %30 = vector.load %arg7[%c0_18, %c0_19] : memref<1x128xf32, #tpu.memory_space<vmem>>, vector<1x128xf32>
    %cst_20 = arith.constant dense<0.000000e+00> : vector<256x128xf32>
    %31 = tpu.matmul %27, %29, %cst_20 {dimension_numbers = #tpu.dot_dimension_numbers<[1], [0], [0], [1], [0, 0, 1, 1], [], []>} : vector<256x128xf32>, vector<128x128xf32>, vector<256x128xf32> -> vector<256x128xf32>
    %32 = vector.broadcast %30 : vector<1x128xf32> to vector<256x128xf32>
    %33 = arith.addf %31, %32 : vector<256x128xf32>
    %cst_21 = arith.constant 0.000000e+00 : f32
    %34 = vector.broadcast %cst_21 : f32 to vector<256x128xf32>
    %35 = arith.maximumf %33, %34 : vector<256x128xf32>
    %c0_22 = arith.constant 0 : index
    %c0_23 = arith.constant 0 : index
    %36 = vector.load %arg8[%c0_22, %c0_23] : memref<128x128xf32, #tpu.memory_space<vmem>>, vector<128x128xf32>
    %c0_24 = arith.constant 0 : index
    %c0_25 = arith.constant 0 : index
    %37 = vector.load %arg9[%c0_24, %c0_25] : memref<1x128xf32, #tpu.memory_space<vmem>>, vector<1x128xf32>
    %cst_26 = arith.constant dense<0.000000e+00> : vector<256x128xf32>
    %38 = tpu.matmul %35, %36, %cst_26 {dimension_numbers = #tpu.dot_dimension_numbers<[1], [0], [0], [1], [0, 0, 1, 1], [], []>} : vector<256x128xf32>, vector<128x128xf32>, vector<256x128xf32> -> vector<256x128xf32>
    %39 = vector.broadcast %37 : vector<1x128xf32> to vector<256x128xf32>
    %40 = arith.addf %38, %39 : vector<256x128xf32>
    %c0_27 = arith.constant 0 : index
    %c0_28 = arith.constant 0 : index
    %41 = vector.load %arg10[%c0_27, %c0_28] : memref<256x128xf32, #tpu.memory_space<vmem>>, vector<256x128xf32>
    tpu.vector_store %arg10[%c0_27, %c0_28], %40 {strides = array<i32>} : memref<256x128xf32, #tpu.memory_space<vmem>>, vector<256x128xf32>,
    return
  }
  func.func @transform_0(%arg0: i32) -> (i32, i32) {
    %c0_i32 = arith.constant 0 : i32
    %c0_i32_0 = arith.constant 0 : i32
    return %arg0, %c0_i32 : i32, i32
  }
  func.func @transform_1(%arg0: i32) -> (i32, i32) {
    %c0_i32 = arith.constant 0 : i32
    %c0_i32_0 = arith.constant 0 : i32
    %c0_i32_1 = arith.constant 0 : i32
    return %c0_i32, %c0_i32_0 : i32, i32
  }
  func.func @transform_2(%arg0: i32) -> (i32, i32) {
    %c0_i32 = arith.constant 0 : i32
    %c0_i32_0 = arith.constant 0 : i32
    %c0_i32_1 = arith.constant 0 : i32
    return %c0_i32, %c0_i32_0 : i32, i32
  }
  func.func @transform_3(%arg0: i32) -> (i32, i32) {
    %c0_i32 = arith.constant 0 : i32
    %c0_i32_0 = arith.constant 0 : i32
    %c0_i32_1 = arith.constant 0 : i32
    return %c0_i32, %c0_i32_0 : i32, i32
  }
  func.func @transform_4(%arg0: i32) -> (i32, i32) {
    %c0_i32 = arith.constant 0 : i32
    %c0_i32_0 = arith.constant 0 : i32
    %c0_i32_1 = arith.constant 0 : i32
    return %c0_i32, %c0_i32_0 : i32, i32
  }
  func.func @transform_5(%arg0: i32) -> (i32, i32) {
    %c0_i32 = arith.constant 0 : i32
    %c0_i32_0 = arith.constant 0 : i32
    %c0_i32_1 = arith.constant 0 : i32
    return %c0_i32, %c0_i32_0 : i32, i32
  }
  func.func @transform_6(%arg0: i32) -> (i32, i32) {
    %c0_i32 = arith.constant 0 : i32
    %c0_i32_0 = arith.constant 0 : i32
    %c0_i32_1 = arith.constant 0 : i32
    return %c0_i32, %c0_i32_0 : i32, i32
  }
  func.func @transform_7(%arg0: i32) -> (i32, i32) {
    %c0_i32 = arith.constant 0 : i32
    %c0_i32_0 = arith.constant 0 : i32
    %c0_i32_1 = arith.constant 0 : i32
    return %c0_i32, %c0_i32_0 : i32, i32
  }
  func.func @transform_8(%arg0: i32) -> (i32, i32) {
    %c0_i32 = arith.constant 0 : i32
    %c0_i32_0 = arith.constant 0 : i32
    %c0_i32_1 = arith.constant 0 : i32
    return %c0_i32, %c0_i32_0 : i32, i32
  }
  func.func @transform_9(%arg0: i32) -> (i32, i32) {
    %c0_i32 = arith.constant 0 : i32
    %c0_i32_0 = arith.constant 0 : i32
    return %arg0, %c0_i32 : i32, i32
  }
  func.func @transform_10(%arg0: i32) -> (i32, i32) {
    %c0_i32 = arith.constant 0 : i32
    %c0_i32_0 = arith.constant 0 : i32
    return %arg0, %c0_i32 : i32, i32
  }
}

</mosaic_0001>

<llo_original>
// kernel: tpu_custom_call.1
$region0: #{tpu_custom_call.1}
  #allocation0 [shape = 'u32[]', space=smem, size = 0x4, offset = 0x4, fixed_abs, tag = 'smem constant byte address 0x4 - core index']
  #allocation1 [shape = 'u32[72,128]{1,0:T(1,128)}', space=vmem, size = 0x9000, scoped, tag = 'internal scratch']
  %s0 = inlined_call_operand.vmem [shape: f32[256,32], index: 0, kind: input, shape index: {}]
  %s1 = inlined_call_operand.vmem [shape: f32[32,128], index: 1, kind: input, shape index: {}]
  %s2 = inlined_call_operand.vmem [shape: f32[1,128], index: 2, kind: input, shape index: {}]
  %s3 = inlined_call_operand.vmem [shape: f32[128,128], index: 3, kind: input, shape index: {}]
  %s4 = inlined_call_operand.vmem [shape: f32[1,128], index: 4, kind: input, shape index: {}]
  %s5 = inlined_call_operand.vmem [shape: f32[128,128], index: 5, kind: input, shape index: {}]
  %s6 = inlined_call_operand.vmem [shape: f32[1,128], index: 6, kind: input, shape index: {}]
  %s7 = inlined_call_operand.hbm [shape: f32[128,128], index: 7, kind: input, shape index: {}]
  %s8 = inlined_call_operand.vmem [shape: f32[1,128], index: 8, kind: input, shape index: {}]
  %s9 = inlined_call_operand.hbm [shape: f32[256,128], index: 9, kind: output, shape index: {0}]
  %s10 = inlined_call_operand.hbm [shape: f32[256,128], index: 10, kind: output, shape index: {1}]
  %11 = xla_tuple %s9, %s10
  %s12 = sld [smem:[#allocation0]]
  $region58: #{tpu_custom_call.1} parent=0
    _
  %s14 = ssub.s32 1, %s12
  %s15 = scalar_select 0, %s14, %s12
  $region1: #{tpu_custom_call.1} parent=0
    #allocation2 [shape = 'u8[65536]{0}', space=vmem, size = 0x10000, scoped, tag = 'input window, operand 7, single buffered']
    #allocation3 [shape = 's32[1]{0}', space=sflag, size = 0x4, scoped, tag = 'scoped memory for tpu_custom_call.1']
    #allocation4 [shape = 's32[1]{0}', space=sflag, size = 0x4, scoped, tag = 'scoped memory for tpu_custom_call.1']
    #allocation5 [shape = 'u8[131072]{0}', space=vmem, size = 0x20000, scoped, tag = 'output window, operand 0, single buffered']
    #allocation6 [shape = 'u8[131072]{0}', space=vmem, size = 0x20000, scoped, tag = 'output window, operand 1, single buffered']
    #allocation7 [shape = 's32[1]{0}', space=sflag, size = 0x4, scoped, tag = 'scoped memory for tpu_custom_call.1']
    %16 = vsyncpa [#allocation3], 0
    %17 = vsyncpa [#allocation4], 0
    %18 = vsyncpa [#allocation7], 0
    // Predicated region
    $region2: #{tpu_custom_call.1} parent=1 // pred_check
      _
    $region3: #{tpu_custom_call.1} parent=1 // pred_check_branch
      %20 = sbr.rel (0) target = $region5
    $region4: #{tpu_custom_call.1} parent=1 // pred_region
      _
    $region5: #{tpu_custom_call.1} parent=1 // pred_fallthru
      _
    // Predicated region
    $region6: #{tpu_custom_call.1} parent=1 // pred_check
      _
    $region7: #{tpu_custom_call.1} parent=1 // pred_check_branch
      %22 = sbr.rel (0) target = $region9
    $region8: #{tpu_custom_call.1} parent=1 // pred_region
      _
    $region9: #{tpu_custom_call.1} parent=1 // pred_fallthru
      _
    // Predicated region
    $region10: #{tpu_custom_call.1} parent=1 // pred_check
      _
    $region11: #{tpu_custom_call.1} parent=1 // pred_check_branch
      %24 = sbr.rel (0) target = $region13
    $region12: #{tpu_custom_call.1} parent=1 // pred_region
      _
    $region13: #{tpu_custom_call.1} parent=1 // pred_fallthru
      _
    // Predicated region
    $region14: #{tpu_custom_call.1} parent=1 // pred_check
      _
    $region15: #{tpu_custom_call.1} parent=1 // pred_check_branch
      %26 = sbr.rel (0) target = $region17
    $region16: #{tpu_custom_call.1} parent=1 // pred_region
      _
    $region17: #{tpu_custom_call.1} parent=1 // pred_fallthru
      _
    // Predicated region
    $region18: #{tpu_custom_call.1} parent=1 // pred_check
      _
    $region19: #{tpu_custom_call.1} parent=1 // pred_check_branch
      %28 = sbr.rel (0) target = $region21
    $region20: #{tpu_custom_call.1} parent=1 // pred_region
      _
    $region21: #{tpu_custom_call.1} parent=1 // pred_fallthru
      _
    // Predicated region
    $region22: #{tpu_custom_call.1} parent=1 // pred_check
      _
    $region23: #{tpu_custom_call.1} parent=1 // pred_check_branch
      %30 = sbr.rel (0) target = $region25
    $region24: #{tpu_custom_call.1} parent=1 // pred_region
      _
    $region25: #{tpu_custom_call.1} parent=1 // pred_fallthru
      _
    // Predicated region
    $region26: #{tpu_custom_call.1} parent=1 // pred_check
      _
    $region27: #{tpu_custom_call.1} parent=1 // pred_check_branch
      %32 = sbr.rel (0) target = $region29
    $region28: #{tpu_custom_call.1} parent=1 // pred_region
      _
    $region29: #{tpu_custom_call.1} parent=1 // pred_fallthru
      _
    // Predicated region
    $region30: #{tpu_custom_call.1} parent=1 // pred_check
      _
    $region31: #{tpu_custom_call.1} parent=1 // pred_check_branch
      %34 = sbr.rel (0) target = $region33
    $region32: #{tpu_custom_call.1} parent=1 // pred_region
      %36 = vsyncadd [#allocation3], 0
      %s37 = sshll.u32 %s7, 4
      %s38 = int_to_ptr.hbm [resolvable:$true] %s37
      %s39 = sshll.u32 [#allocation2], 4
      %s40 = int_to_ptr.vmem [resolvable:$true] %s39
      %45 = dma.hbm_to_vmem [thread:$0]  %s38, 2048, %s40, [#allocation3], 128, 128, 8
    $region33: #{tpu_custom_call.1} parent=1 // pred_fallthru
      _
    // Predicated region
    $region34: #{tpu_custom_call.1} parent=1 // pred_check
      _
    $region35: #{tpu_custom_call.1} parent=1 // pred_check_branch
      %47 = sbr.rel (0) target = $region37
    $region36: #{tpu_custom_call.1} parent=1 // pred_region
      _
    $region37: #{tpu_custom_call.1} parent=1 // pred_fallthru
      _
    // Predicated region
    $region38: #{tpu_custom_call.1} parent=1 // pred_check
      _
    $region39: #{tpu_custom_call.1} parent=1 // pred_check_branch
      %49 = sbr.rel (0) target = $region41
    $region40: #{tpu_custom_call.1} parent=1 // pred_region
      %51 = dma.done [#allocation3], 2048
    $region41: #{tpu_custom_call.1} parent=1 // pred_fallthru
      _
    %v52 = vld [vmem:[%s0] sm:$0xff]
    %v53 = vld [vmem:[%s0 + $0x8] sm:$0xff]
    %v54 = vld [vmem:[%s0 + $0x10] sm:$0xff]
    %v55 = vld [vmem:[%s0 + $0x18] sm:$0xff]
    %v56 = vld [vmem:[%s0 + $0x20] sm:$0xff]
    %v57 = vld [vmem:[%s0 + $0x28] sm:$0xff]
    %v58 = vld [vmem:[%s0 + $0x30] sm:$0xff]
    %v59 = vld [vmem:[%s0 + $0x38] sm:$0xff]
    %v60 = vld [vmem:[%s0 + $0x40] sm:$0xff]
    %v61 = vld [vmem:[%s0 + $0x48] sm:$0xff]
    %v62 = vld [vmem:[%s0 + $0x50] sm:$0xff]
    %v63 = vld [vmem:[%s0 + $0x58] sm:$0xff]
    %v64 = vld [vmem:[%s0 + $0x60] sm:$0xff]
    %v65 = vld [vmem:[%s0 + $0x68] sm:$0xff]
    %v66 = vld [vmem:[%s0 + $0x70] sm:$0xff]
    %v67 = vld [vmem:[%s0 + $0x78] sm:$0xff]
    %v68 = vld [vmem:[%s0 + $0x80] sm:$0xff]
    %v69 = vld [vmem:[%s0 + $0x88] sm:$0xff]
    %v70 = vld [vmem:[%s0 + $0x90] sm:$0xff]
    %v71 = vld [vmem:[%s0 + $0x98] sm:$0xff]
    %v72 = vld [vmem:[%s0 + $0xa0] sm:$0xff]
    %v73 = vld [vmem:[%s0 + $0xa8] sm:$0xff]
    %v74 = vld [vmem:[%s0 + $0xb0] sm:$0xff]
    %v75 = vld [vmem:[%s0 + $0xb8] sm:$0xff]
    %v76 = vld [vmem:[%s0 + $0xc0] sm:$0xff]
    %v77 = vld [vmem:[%s0 + $0xc8] sm:$0xff]
    %v78 = vld [vmem:[%s0 + $0xd0] sm:$0xff]
    %v79 = vld [vmem:[%s0 + $0xd8] sm:$0xff]
    %v80 = vld [vmem:[%s0 + $0xe0] sm:$0xff]
    %v81 = vld [vmem:[%s0 + $0xe8] sm:$0xff]
    %v82 = vld [vmem:[%s0 + $0xf0] sm:$0xff]
    %v83 = vld [vmem:[%s0 + $0xf8] sm:$0xff]
    %v84 = vld [vmem:[%s1] sm:$0xff]
    %v85 = vld [vmem:[%s1 + $0x8] sm:$0xff]
    %v86 = vld [vmem:[%s1 + $0x10] sm:$0xff]
    %v87 = vld [vmem:[%s1 + $0x18] sm:$0xff]
    %v88 = vld [vmem:[%s2] sm:$0x1]
    %v90 = vperm.slane %v88, 0
    %vm92 = vcmask 261120
    %v94 = vsel %vm92, %v52, 0
    %v97 = vsel %vm92, %v53, 0
    %v100 = vsel %vm92, %v54, 0
    %v103 = vsel %vm92, %v55, 0
    %v106 = vsel %vm92, %v56, 0
    %v109 = vsel %vm92, %v57, 0
    %v112 = vsel %vm92, %v58, 0
    %v115 = vsel %vm92, %v59, 0
    %v118 = vsel %vm92, %v60, 0
    %v121 = vsel %vm92, %v61, 0
    %v124 = vsel %vm92, %v62, 0
    %v127 = vsel %vm92, %v63, 0
    %v130 = vsel %vm92, %v64, 0
    %v133 = vsel %vm92, %v65, 0
    %v136 = vsel %vm92, %v66, 0
    %v139 = vsel %vm92, %v67, 0
    %v142 = vsel %vm92, %v68, 0
    %v145 = vsel %vm92, %v69, 0
    %v148 = vsel %vm92, %v70, 0
    %v151 = vsel %vm92, %v71, 0
    %v154 = vsel %vm92, %v72, 0
    %v157 = vsel %vm92, %v73, 0
    %v160 = vsel %vm92, %v74, 0
    %v163 = vsel %vm92, %v75, 0
    %v166 = vsel %vm92, %v76, 0
    %v169 = vsel %vm92, %v77, 0
    %v172 = vsel %vm92, %v78, 0
    %v175 = vsel %vm92, %v79, 0
    %v178 = vsel %vm92, %v80, 0
    %v181 = vsel %vm92, %v81, 0
    %v184 = vsel %vm92, %v82, 0
    %v187 = vsel %vm92, %v83, 0
    %189 = vmatpush.msra.mxu0 0.0
    %190 = vmatpush.msra.mxu0 0.0
    %191 = vmatpush.msra.mxu0 0.0
    %192 = vmatpush.msra.mxu0 0.0
    %193 = vmatpush.msra.mxu0 0.0
    %194 = vmatpush.msra.mxu0 0.0
    %195 = vmatpush.msra.mxu0 0.0
    %196 = vmatpush.msra.mxu0 0.0
    %197 = vmatpush.msra.mxu0 0.0
    %198 = vmatpush.msra.mxu0 0.0
    %199 = vmatpush.msra.mxu0 0.0
    %200 = vmatpush.msra.mxu0 0.0
    %201 = vmatpush.msra.mxu0 %v87
    %202 = vmatpush.msra.mxu0 %v86
    %203 = vmatpush.msra.mxu0 %v85
    %204 = vmatpush.msra.mxu0 %v84
    %205 = vmatmul.f32.gmra.mxu0 %v94
    %v206 = vpop.f32.mrf.mxu0
    %v207 = vadd.f32 %v90, %v206
    %208 = vmatmul.f32.gmra.mxu0 %v97
    %v209 = vpop.f32.mrf.mxu0
    %v210 = vadd.f32 %v90, %v209
    %211 = vmatmul.f32.gmra.mxu0 %v100
    %v212 = vpop.f32.mrf.mxu0
    %v213 = vadd.f32 %v90, %v212
    %214 = vmatmul.f32.gmra.mxu0 %v103
    %v215 = vpop.f32.mrf.mxu0
    %v216 = vadd.f32 %v90, %v215
    %217 = vmatmul.f32.gmra.mxu0 %v106
    %v218 = vpop.f32.mrf.mxu0
    %v219 = vadd.f32 %v90, %v218
    %220 = vmatmul.f32.gmra.mxu0 %v109
    %v221 = vpop.f32.mrf.mxu0
    %v222 = vadd.f32 %v90, %v221
    %223 = vmatmul.f32.gmra.mxu0 %v112
    %v224 = vpop.f32.mrf.mxu0
    %v225 = vadd.f32 %v90, %v224
    %226 = vmatmul.f32.gmra.mxu0 %v115
    %v227 = vpop.f32.mrf.mxu0
    %v228 = vadd.f32 %v90, %v227
    %229 = vmatmul.f32.gmra.mxu0 %v118
    %v230 = vpop.f32.mrf.mxu0
    %v231 = vadd.f32 %v90, %v230
    %232 = vmatmul.f32.gmra.mxu0 %v121
    %v233 = vpop.f32.mrf.mxu0
    %v234 = vadd.f32 %v90, %v233
    %235 = vmatmul.f32.gmra.mxu0 %v124
    %v236 = vpop.f32.mrf.mxu0
    %v237 = vadd.f32 %v90, %v236
    %238 = vmatmul.f32.gmra.mxu0 %v127
    %v239 = vpop.f32.mrf.mxu0
    %v240 = vadd.f32 %v90, %v239
    %241 = vmatmul.f32.gmra.mxu0 %v130
    %v242 = vpop.f32.mrf.mxu0
    %v243 = vadd.f32 %v90, %v242
    %244 = vmatmul.f32.gmra.mxu0 %v133
    %v245 = vpop.f32.mrf.mxu0
    %v246 = vadd.f32 %v90, %v245
    %247 = vmatmul.f32.gmra.mxu0 %v136
    %v248 = vpop.f32.mrf.mxu0
    %v249 = vadd.f32 %v90, %v248
    %250 = vmatmul.f32.gmra.mxu0 %v139
    %v251 = vpop.f32.mrf.mxu0
    %v252 = vadd.f32 %v90, %v251
    %253 = vmatmul.f32.gmra.mxu0 %v142
    %v254 = vpop.f32.mrf.mxu0
    %v255 = vadd.f32 %v90, %v254
    %256 = vmatmul.f32.gmra.mxu0 %v145
    %v257 = vpop.f32.mrf.mxu0
    %v258 = vadd.f32 %v90, %v257
    %259 = vmatmul.f32.gmra.mxu0 %v148
    %v260 = vpop.f32.mrf.mxu0
    %v261 = vadd.f32 %v90, %v260
    %262 = vmatmul.f32.gmra.mxu0 %v151
    %v263 = vpop.f32.mrf.mxu0
    %v264 = vadd.f32 %v90, %v263
    %265 = vmatmul.f32.gmra.mxu0 %v154
    %v266 = vpop.f32.mrf.mxu0
    %v267 = vadd.f32 %v90, %v266
    %268 = vmatmul.f32.gmra.mxu0 %v157
    %v269 = vpop.f32.mrf.mxu0
    %v270 = vadd.f32 %v90, %v269
    %271 = vmatmul.f32.gmra.mxu0 %v160
    %v272 = vpop.f32.mrf.mxu0
    %v273 = vadd.f32 %v90, %v272
    %274 = vmatmul.f32.gmra.mxu0 %v163
    %v275 = vpop.f32.mrf.mxu0
    %v276 = vadd.f32 %v90, %v275
    %277 = vmatmul.f32.gmra.mxu0 %v166
    %v278 = vpop.f32.mrf.mxu0
    %v279 = vadd.f32 %v90, %v278
    %280 = vmatmul.f32.gmra.mxu0 %v169
    %v281 = vpop.f32.mrf.mxu0
    %v282 = vadd.f32 %v90, %v281
    %283 = vmatmul.f32.gmra.mxu0 %v172
    %v284 = vpop.f32.mrf.mxu0
    %v285 = vadd.f32 %v90, %v284
    %286 = vmatmul.f32.gmra.mxu0 %v175
    %v287 = vpop.f32.mrf.mxu0
    %v288 = vadd.f32 %v90, %v287
    %289 = vmatmul.f32.gmra.mxu0 %v178
    %v290 = vpop.f32.mrf.mxu0
    %v291 = vadd.f32 %v90, %v290
    %292 = vmatmul.f32.gmra.mxu0 %v181
    %v293 = vpop.f32.mrf.mxu0
    %v294 = vadd.f32 %v90, %v293
    %295 = vmatmul.f32.gmra.mxu0 %v184
    %v296 = vpop.f32.mrf.mxu0
    %v297 = vadd.f32 %v90, %v296
    %298 = vmatmul.f32.gmra.mxu0 %v187
    %v299 = vpop.f32.mrf.mxu0
    %v300 = vadd.f32 %v90, %v299
    %301 = vdwg.mxu0
    %v302 = vmax.f32 %v207, 0.0
    %v303 = vmax.f32 %v210, 0.0
    %v304 = vmax.f32 %v213, 0.0
    %v305 = vmax.f32 %v216, 0.0
    %v306 = vmax.f32 %v219, 0.0
    %v307 = vmax.f32 %v222, 0.0
    %v308 = vmax.f32 %v225, 0.0
    %v309 = vmax.f32 %v228, 0.0
    %v310 = vmax.f32 %v231, 0.0
    %v311 = vmax.f32 %v234, 0.0
    %v312 = vmax.f32 %v237, 0.0
    %v313 = vmax.f32 %v240, 0.0
    %v314 = vmax.f32 %v243, 0.0
    %v315 = vmax.f32 %v246, 0.0
    %v316 = vmax.f32 %v249, 0.0
    %v317 = vmax.f32 %v252, 0.0
    %v318 = vmax.f32 %v255, 0.0
    %v319 = vmax.f32 %v258, 0.0
    %v320 = vmax.f32 %v261, 0.0
    %v321 = vmax.f32 %v264, 0.0
    %v322 = vmax.f32 %v267, 0.0
    %v323 = vmax.f32 %v270, 0.0
    %v324 = vmax.f32 %v273, 0.0
    %v325 = vmax.f32 %v276, 0.0
    %v326 = vmax.f32 %v279, 0.0
    %v327 = vmax.f32 %v282, 0.0
    %v328 = vmax.f32 %v285, 0.0
    %v329 = vmax.f32 %v288, 0.0
    %v330 = vmax.f32 %v291, 0.0
    %v331 = vmax.f32 %v294, 0.0
    %v332 = vmax.f32 %v297, 0.0
    %v333 = vmax.f32 %v300, 0.0
    %v334 = vld [vmem:[%s3] sm:$0xff]
    %v335 = vld [vmem:[%s3 + $0x8] sm:$0xff]
    %v336 = vld [vmem:[%s3 + $0x10] sm:$0xff]
    %v337 = vld [vmem:[%s3 + $0x18] sm:$0xff]
    %v338 = vld [vmem:[%s3 + $0x20] sm:$0xff]
    %v339 = vld [vmem:[%s3 + $0x28] sm:$0xff]
    %v340 = vld [vmem:[%s3 + $0x30] sm:$0xff]
    %v341 = vld [vmem:[%s3 + $0x38] sm:$0xff]
    %v342 = vld [vmem:[%s3 + $0x40] sm:$0xff]
    %v343 = vld [vmem:[%s3 + $0x48] sm:$0xff]
    %v344 = vld [vmem:[%s3 + $0x50] sm:$0xff]
    %v345 = vld [vmem:[%s3 + $0x58] sm:$0xff]
    %v346 = vld [vmem:[%s3 + $0x60] sm:$0xff]
    %v347 = vld [vmem:[%s3 + $0x68] sm:$0xff]
    %v348 = vld [vmem:[%s3 + $0x70] sm:$0xff]
    %v349 = vld [vmem:[%s3 + $0x78] sm:$0xff]
    %v350 = vld [vmem:[%s4] sm:$0x1]
    %v352 = vperm.slane %v350, 0
    %354 = vmatpush.msra.mxu0 %v349
    %355 = vmatpush.msra.mxu0 %v348
    %356 = vmatpush.msra.mxu0 %v347
    %357 = vmatpush.msra.mxu0 %v346
    %358 = vmatpush.msra.mxu0 %v345
    %359 = vmatpush.msra.mxu0 %v344
    %360 = vmatpush.msra.mxu0 %v343
    %361 = vmatpush.msra.mxu0 %v342
    %362 = vmatpush.msra.mxu0 %v341
    %363 = vmatpush.msra.mxu0 %v340
    %364 = vmatpush.msra.mxu0 %v339
    %365 = vmatpush.msra.mxu0 %v338
    %366 = vmatpush.msra.mxu0 %v337
    %367 = vmatpush.msra.mxu0 %v336
    %368 = vmatpush.msra.mxu0 %v335
    %369 = vmatpush.msra.mxu0 %v334
    %370 = vmatmul.f32.gmra.mxu0 %v302
    %v371 = vpop.f32.mrf.mxu0
    %v372 = vadd.f32 %v352, %v371
    %373 = vmatmul.f32.gmra.mxu0 %v303
    %v374 = vpop.f32.mrf.mxu0
    %v375 = vadd.f32 %v352, %v374
    %376 = vmatmul.f32.gmra.mxu0 %v304
    %v377 = vpop.f32.mrf.mxu0
    %v378 = vadd.f32 %v352, %v377
    %379 = vmatmul.f32.gmra.mxu0 %v305
    %v380 = vpop.f32.mrf.mxu0
    %v381 = vadd.f32 %v352, %v380
    %382 = vmatmul.f32.gmra.mxu0 %v306
    %v383 = vpop.f32.mrf.mxu0
    %v384 = vadd.f32 %v352, %v383
    %385 = vmatmul.f32.gmra.mxu0 %v307
    %v386 = vpop.f32.mrf.mxu0
    %v387 = vadd.f32 %v352, %v386
    %388 = vmatmul.f32.gmra.mxu0 %v308
    %v389 = vpop.f32.mrf.mxu0
    %v390 = vadd.f32 %v352, %v389
    %391 = vmatmul.f32.gmra.mxu0 %v309
    %v392 = vpop.f32.mrf.mxu0
    %v393 = vadd.f32 %v352, %v392
    %394 = vmatmul.f32.gmra.mxu0 %v310
    %v395 = vpop.f32.mrf.mxu0
    %v396 = vadd.f32 %v352, %v395
    %397 = vmatmul.f32.gmra.mxu0 %v311
    %v398 = vpop.f32.mrf.mxu0
    %v399 = vadd.f32 %v352, %v398
    %400 = vmatmul.f32.gmra.mxu0 %v312
    %v401 = vpop.f32.mrf.mxu0
    %v402 = vadd.f32 %v352, %v401
    %403 = vmatmul.f32.gmra.mxu0 %v313
    %v404 = vpop.f32.mrf.mxu0
    %v405 = vadd.f32 %v352, %v404
    %406 = vmatmul.f32.gmra.mxu0 %v314
    %v407 = vpop.f32.mrf.mxu0
    %v408 = vadd.f32 %v352, %v407
    %409 = vmatmul.f32.gmra.mxu0 %v315
    %v410 = vpop.f32.mrf.mxu0
    %v411 = vadd.f32 %v352, %v410
    %412 = vmatmul.f32.gmra.mxu0 %v316
    %v413 = vpop.f32.mrf.mxu0
    %v414 = vadd.f32 %v352, %v413
    %415 = vmatmul.f32.gmra.mxu0 %v317
    %v416 = vpop.f32.mrf.mxu0
    %v417 = vadd.f32 %v352, %v416
    %418 = vmatmul.f32.gmra.mxu0 %v318
    %v419 = vpop.f32.mrf.mxu0
    %v420 = vadd.f32 %v352, %v419
    %421 = vmatmul.f32.gmra.mxu0 %v319
    %v422 = vpop.f32.mrf.mxu0
    %v423 = vadd.f32 %v352, %v422
    %424 = vmatmul.f32.gmra.mxu0 %v320
    %v425 = vpop.f32.mrf.mxu0
    %v426 = vadd.f32 %v352, %v425
    %427 = vmatmul.f32.gmra.mxu0 %v321
    %v428 = vpop.f32.mrf.mxu0
    %v429 = vadd.f32 %v352, %v428
    %430 = vmatmul.f32.gmra.mxu0 %v322
    %v431 = vpop.f32.mrf.mxu0
    %v432 = vadd.f32 %v352, %v431
    %433 = vmatmul.f32.gmra.mxu0 %v323
    %v434 = vpop.f32.mrf.mxu0
    %v435 = vadd.f32 %v352, %v434
    %436 = vmatmul.f32.gmra.mxu0 %v324
    %v437 = vpop.f32.mrf.mxu0
    %v438 = vadd.f32 %v352, %v437
    %439 = vmatmul.f32.gmra.mxu0 %v325
    %v440 = vpop.f32.mrf.mxu0
    %v441 = vadd.f32 %v352, %v440
    %442 = vmatmul.f32.gmra.mxu0 %v326
    %v443 = vpop.f32.mrf.mxu0
    %v444 = vadd.f32 %v352, %v443
    %445 = vmatmul.f32.gmra.mxu0 %v327
    %v446 = vpop.f32.mrf.mxu0
    %v447 = vadd.f32 %v352, %v446
    %448 = vmatmul.f32.gmra.mxu0 %v328
    %v449 = vpop.f32.mrf.mxu0
    %v450 = vadd.f32 %v352, %v449
    %451 = vmatmul.f32.gmra.mxu0 %v329
    %v452 = vpop.f32.mrf.mxu0
    %v453 = vadd.f32 %v352, %v452
    %454 = vmatmul.f32.gmra.mxu0 %v330
    %v455 = vpop.f32.mrf.mxu0
    %v456 = vadd.f32 %v352, %v455
    %457 = vmatmul.f32.gmra.mxu0 %v331
    %v458 = vpop.f32.mrf.mxu0
    %v459 = vadd.f32 %v352, %v458
    %460 = vmatmul.f32.gmra.mxu0 %v332
    %v461 = vpop.f32.mrf.mxu0
    %v462 = vadd.f32 %v352, %v461
    %463 = vmatmul.f32.gmra.mxu0 %v333
    %v464 = vpop.f32.mrf.mxu0
    %v465 = vadd.f32 %v352, %v464
    %466 = vdwg.mxu0
    %v467 = vlaneseq
    %v468 = vand.u32 %v467, 127
    %vm469 = vcmp.lt.s32.totalorder %v468, 16
    %v470 = vsel %vm469, %v372, -inf
    %v471 = vsel %vm469, %v375, -inf
    %v472 = vsel %vm469, %v378, -inf
    %v473 = vsel %vm469, %v381, -inf
    %v474 = vsel %vm469, %v384, -inf
    %v475 = vsel %vm469, %v387, -inf
    %v476 = vsel %vm469, %v390, -inf
    %v477 = vsel %vm469, %v393, -inf
    %v478 = vsel %vm469, %v396, -inf
    %v479 = vsel %vm469, %v399, -inf
    %v480 = vsel %vm469, %v402, -inf
    %v481 = vsel %vm469, %v405, -inf
    %v482 = vsel %vm469, %v408, -inf
    %v483 = vsel %vm469, %v411, -inf
    %v484 = vsel %vm469, %v414, -inf
    %v485 = vsel %vm469, %v417, -inf
    %v486 = vsel %vm469, %v420, -inf
    %v487 = vsel %vm469, %v423, -inf
    %v488 = vsel %vm469, %v426, -inf
    %v489 = vsel %vm469, %v429, -inf
    %v490 = vsel %vm469, %v432, -inf
    %v491 = vsel %vm469, %v435, -inf
    %v492 = vsel %vm469, %v438, -inf
    %v493 = vsel %vm469, %v441, -inf
    %v494 = vsel %vm469, %v444, -inf
    %v495 = vsel %vm469, %v447, -inf
    %v496 = vsel %vm469, %v450, -inf
    %v497 = vsel %vm469, %v453, -inf
    %v498 = vsel %vm469, %v456, -inf
    %v499 = vsel %vm469, %v459, -inf
    %v500 = vsel %vm469, %v462, -inf
    %v501 = vsel %vm469, %v465, -inf
    %502 = vmax.xlane.f32.xlu0 %v470
    %v503 = vpop.xlane.xlu0 %502
    %504 = vmax.xlane.f32.xlu0 %v471
    %v505 = vpop.xlane.xlu0 %504
    %506 = vmax.xlane.f32.xlu0 %v472
    %v507 = vpop.xlane.xlu0 %506
    %508 = vmax.xlane.f32.xlu0 %v473
    %v509 = vpop.xlane.xlu0 %508
    %510 = vmax.xlane.f32.xlu0 %v474
    %v511 = vpop.xlane.xlu0 %510
    %512 = vmax.xlane.f32.xlu0 %v475
    %v513 = vpop.xlane.xlu0 %512
    %514 = vmax.xlane.f32.xlu0 %v476
    %v515 = vpop.xlane.xlu0 %514
    %516 = vmax.xlane.f32.xlu0 %v477
    %v517 = vpop.xlane.xlu0 %516
    %518 = vmax.xlane.f32.xlu0 %v478
    %v519 = vpop.xlane.xlu0 %518
    %520 = vmax.xlane.f32.xlu0 %v479
    %v521 = vpop.xlane.xlu0 %520
    %522 = vmax.xlane.f32.xlu0 %v480
    %v523 = vpop.xlane.xlu0 %522
    %524 = vmax.xlane.f32.xlu0 %v481
    %v525 = vpop.xlane.xlu0 %524
    %526 = vmax.xlane.f32.xlu0 %v482
    %v527 = vpop.xlane.xlu0 %526
    %528 = vmax.xlane.f32.xlu0 %v483
    %v529 = vpop.xlane.xlu0 %528
    %530 = vmax.xlane.f32.xlu0 %v484
    %v531 = vpop.xlane.xlu0 %530
    %532 = vmax.xlane.f32.xlu0 %v485
    %v533 = vpop.xlane.xlu0 %532
    %534 = vmax.xlane.f32.xlu0 %v486
    %v535 = vpop.xlane.xlu0 %534
    %536 = vmax.xlane.f32.xlu0 %v487
    %v537 = vpop.xlane.xlu0 %536
    %538 = vmax.xlane.f32.xlu0 %v488
    %v539 = vpop.xlane.xlu0 %538
    %540 = vmax.xlane.f32.xlu0 %v489
    %v541 = vpop.xlane.xlu0 %540
    %542 = vmax.xlane.f32.xlu0 %v490
    %v543 = vpop.xlane.xlu0 %542
    %544 = vmax.xlane.f32.xlu0 %v491
    %v545 = vpop.xlane.xlu0 %544
    %546 = vmax.xlane.f32.xlu0 %v492
    %v547 = vpop.xlane.xlu0 %546
    %548 = vmax.xlane.f32.xlu0 %v493
    %v549 = vpop.xlane.xlu0 %548
    %550 = vmax.xlane.f32.xlu0 %v494
    %v551 = vpop.xlane.xlu0 %550
    %552 = vmax.xlane.f32.xlu0 %v495
    %v553 = vpop.xlane.xlu0 %552
    %554 = vmax.xlane.f32.xlu0 %v496
    %v555 = vpop.xlane.xlu0 %554
    %556 = vmax.xlane.f32.xlu0 %v497
    %v557 = vpop.xlane.xlu0 %556
    %558 = vmax.xlane.f32.xlu0 %v498
    %v559 = vpop.xlane.xlu0 %558
    %560 = vmax.xlane.f32.xlu0 %v499
    %v561 = vpop.xlane.xlu0 %560
    %562 = vmax.xlane.f32.xlu0 %v500
    %v563 = vpop.xlane.xlu0 %562
    %564 = vmax.xlane.f32.xlu0 %v501
    %v565 = vpop.xlane.xlu0 %564
    %v566 = vsub.f32 %v470, %v503
    %v567 = vsub.f32 %v471, %v505
    %v568 = vsub.f32 %v472, %v507
    %v569 = vsub.f32 %v473, %v509
    %v570 = vsub.f32 %v474, %v511
    %v571 = vsub.f32 %v475, %v513
    %v572 = vsub.f32 %v476, %v515
    %v573 = vsub.f32 %v477, %v517
    %v574 = vsub.f32 %v478, %v519
    %v575 = vsub.f32 %v479, %v521
    %v576 = vsub.f32 %v480, %v523
    %v577 = vsub.f32 %v481, %v525
    %v578 = vsub.f32 %v482, %v527
    %v579 = vsub.f32 %v483, %v529
    %v580 = vsub.f32 %v484, %v531
    %v581 = vsub.f32 %v485, %v533
    %v582 = vsub.f32 %v486, %v535
    %v583 = vsub.f32 %v487, %v537
    %v584 = vsub.f32 %v488, %v539
    %v585 = vsub.f32 %v489, %v541
    %v586 = vsub.f32 %v490, %v543
    %v587 = vsub.f32 %v491, %v545
    %v588 = vsub.f32 %v492, %v547
    %v589 = vsub.f32 %v493, %v549
    %v590 = vsub.f32 %v494, %v551
    %v591 = vsub.f32 %v495, %v553
    %v592 = vsub.f32 %v496, %v555
    %v593 = vsub.f32 %v497, %v557
    %v594 = vsub.f32 %v498, %v559
    %v595 = vsub.f32 %v499, %v561
    %v596 = vsub.f32 %v500, %v563
    %v597 = vsub.f32 %v501, %v565
    %v598 = vmul.f32 %v566, 1.442695
    %v599 = vpow.pop %v598
    %v600 = vmul.f32 %v567, 1.442695
    %v601 = vpow.pop %v600
    %v602 = vmul.f32 %v568, 1.442695
    %v603 = vpow.pop %v602
    %v604 = vmul.f32 %v569, 1.442695
    %v605 = vpow.pop %v604
    %v606 = vmul.f32 %v570, 1.442695
    %v607 = vpow.pop %v606
    %v608 = vmul.f32 %v571, 1.442695
    %v609 = vpow.pop %v608
    %v610 = vmul.f32 %v572, 1.442695
    %v611 = vpow.pop %v610
    %v612 = vmul.f32 %v573, 1.442695
    %v613 = vpow.pop %v612
    %v614 = vmul.f32 %v574, 1.442695
    %v615 = vpow.pop %v614
    %v616 = vmul.f32 %v575, 1.442695
    %v617 = vpow.pop %v616
    %v618 = vmul.f32 %v576, 1.442695
    %v619 = vpow.pop %v618
    %v620 = vmul.f32 %v577, 1.442695
    %v621 = vpow.pop %v620
    %v622 = vmul.f32 %v578, 1.442695
    %v623 = vpow.pop %v622
    %v624 = vmul.f32 %v579, 1.442695
    %v625 = vpow.pop %v624
    %v626 = vmul.f32 %v580, 1.442695
    %v627 = vpow.pop %v626
    %v628 = vmul.f32 %v581, 1.442695
    %v629 = vpow.pop %v628
    %v630 = vmul.f32 %v582, 1.442695
    %v631 = vpow.pop %v630
    %v632 = vmul.f32 %v583, 1.442695
    %v633 = vpow.pop %v632
    %v634 = vmul.f32 %v584, 1.442695
    %v635 = vpow.pop %v634
    %v636 = vmul.f32 %v585, 1.442695
    %v637 = vpow.pop %v636
    %v638 = vmul.f32 %v586, 1.442695
    %v639 = vpow.pop %v638
    %v640 = vmul.f32 %v587, 1.442695
    %v641 = vpow.pop %v640
    %v642 = vmul.f32 %v588, 1.442695
    %v643 = vpow.pop %v642
    %v644 = vmul.f32 %v589, 1.442695
    %v645 = vpow.pop %v644
    %v646 = vmul.f32 %v590, 1.442695
    %v647 = vpow.pop %v646
    %v648 = vmul.f32 %v591, 1.442695
    %v649 = vpow.pop %v648
    %v650 = vmul.f32 %v592, 1.442695
    %v651 = vpow.pop %v650
    %v652 = vmul.f32 %v593, 1.442695
    %v653 = vpow.pop %v652
    %v654 = vmul.f32 %v594, 1.442695
    %v655 = vpow.pop %v654
    %v656 = vmul.f32 %v595, 1.442695
    %v657 = vpow.pop %v656
    %v658 = vmul.f32 %v596, 1.442695
    %v659 = vpow.pop %v658
    %v660 = vmul.f32 %v597, 1.442695
    %v661 = vpow.pop %v660
    %662 = vadd.xlane.f32.xlu0 %v599
    %v663 = vpop.xlane.xlu0 %662
    %664 = vadd.xlane.f32.xlu0 %v601
    %v665 = vpop.xlane.xlu0 %664
    %666 = vadd.xlane.f32.xlu0 %v603
    %v667 = vpop.xlane.xlu0 %666
    %668 = vadd.xlane.f32.xlu0 %v605
    %v669 = vpop.xlane.xlu0 %668
    %670 = vadd.xlane.f32.xlu0 %v607
    %v671 = vpop.xlane.xlu0 %670
    %672 = vadd.xlane.f32.xlu0 %v609
    %v673 = vpop.xlane.xlu0 %672
    %674 = vadd.xlane.f32.xlu0 %v611
    %v675 = vpop.xlane.xlu0 %674
    %676 = vadd.xlane.f32.xlu0 %v613
    %v677 = vpop.xlane.xlu0 %676
    %678 = vadd.xlane.f32.xlu0 %v615
    %v679 = vpop.xlane.xlu0 %678
    %680 = vadd.xlane.f32.xlu0 %v617
    %v681 = vpop.xlane.xlu0 %680
    %682 = vadd.xlane.f32.xlu0 %v619
    %v683 = vpop.xlane.xlu0 %682
    %684 = vadd.xlane.f32.xlu0 %v621
    %v685 = vpop.xlane.xlu0 %684
    %686 = vadd.xlane.f32.xlu0 %v623
    %v687 = vpop.xlane.xlu0 %686
    %688 = vadd.xlane.f32.xlu0 %v625
    %v689 = vpop.xlane.xlu0 %688
    %690 = vadd.xlane.f32.xlu0 %v627
    %v691 = vpop.xlane.xlu0 %690
    %692 = vadd.xlane.f32.xlu0 %v629
    %v693 = vpop.xlane.xlu0 %692
    %694 = vadd.xlane.f32.xlu0 %v631
    %v695 = vpop.xlane.xlu0 %694
    %696 = vadd.xlane.f32.xlu0 %v633
    %v697 = vpop.xlane.xlu0 %696
    %698 = vadd.xlane.f32.xlu0 %v635
    %v699 = vpop.xlane.xlu0 %698
    %700 = vadd.xlane.f32.xlu0 %v637
    %v701 = vpop.xlane.xlu0 %700
    %702 = vadd.xlane.f32.xlu0 %v639
    %v703 = vpop.xlane.xlu0 %702
    %704 = vadd.xlane.f32.xlu0 %v641
    %v705 = vpop.xlane.xlu0 %704
    %706 = vadd.xlane.f32.xlu0 %v643
    %v707 = vpop.xlane.xlu0 %706
    %708 = vadd.xlane.f32.xlu0 %v645
    %v709 = vpop.xlane.xlu0 %708
    %710 = vadd.xlane.f32.xlu0 %v647
    %v711 = vpop.xlane.xlu0 %710
    %712 = vadd.xlane.f32.xlu0 %v649
    %v713 = vpop.xlane.xlu0 %712
    %714 = vadd.xlane.f32.xlu0 %v651
    %v715 = vpop.xlane.xlu0 %714
    %716 = vadd.xlane.f32.xlu0 %v653
    %v717 = vpop.xlane.xlu0 %716
    %718 = vadd.xlane.f32.xlu0 %v655
    %v719 = vpop.xlane.xlu0 %718
    %720 = vadd.xlane.f32.xlu0 %v657
    %v721 = vpop.xlane.xlu0 %720
    %722 = vadd.xlane.f32.xlu0 %v659
    %v723 = vpop.xlane.xlu0 %722
    %724 = vadd.xlane.f32.xlu0 %v661
    %v725 = vpop.xlane.xlu0 %724
    %v726 = vrcp.pop %v663
    %v727 = vmul.f32 %v663, %v726
    %v728 = vsub.f32 1.0, %v727
    %v729 = vmul.f32 %v726, %v728
    %v730 = vadd.f32 %v726, %v729
    %vm731 = vweird.f32 %v663
    %vm732 = vweird.f32 %v726
    %vm733 = vmor %vm731, %vm732
    %v734 = vsel %vm733, %v726, %v730
    %v735 = vand.u32 2147483647, %v663
    %vm736 = vcmp.eq.f32.partialorder %v735, 8.507059e+37
    %v737 = vand.u32 %v663, 2147483648
    %v738 = vor.u32 1.1754944e-38, %v737
    %v739 = vsel %vm736, %v738, %v734
    %v740 = vrcp.pop %v665
    %v741 = vmul.f32 %v665, %v740
    %v742 = vsub.f32 1.0, %v741
    %v743 = vmul.f32 %v740, %v742
    %v744 = vadd.f32 %v740, %v743
    %vm745 = vweird.f32 %v665
    %vm746 = vweird.f32 %v740
    %vm747 = vmor %vm745, %vm746
    %v748 = vsel %vm747, %v740, %v744
    %v749 = vand.u32 2147483647, %v665
    %vm750 = vcmp.eq.f32.partialorder %v749, 8.507059e+37
    %v751 = vand.u32 %v665, 2147483648
    %v752 = vor.u32 1.1754944e-38, %v751
    %v753 = vsel %vm750, %v752, %v748
    %v754 = vrcp.pop %v667
    %v755 = vmul.f32 %v667, %v754
    %v756 = vsub.f32 1.0, %v755
    %v757 = vmul.f32 %v754, %v756
    %v758 = vadd.f32 %v754, %v757
    %vm759 = vweird.f32 %v667
    %vm760 = vweird.f32 %v754
    %vm761 = vmor %vm759, %vm760
    %v762 = vsel %vm761, %v754, %v758
    %v763 = vand.u32 2147483647, %v667
    %vm764 = vcmp.eq.f32.partialorder %v763, 8.507059e+37
    %v765 = vand.u32 %v667, 2147483648
    %v766 = vor.u32 1.1754944e-38, %v765
    %v767 = vsel %vm764, %v766, %v762
    %v768 = vrcp.pop %v669
    %v769 = vmul.f32 %v669, %v768
    %v770 = vsub.f32 1.0, %v769
    %v771 = vmul.f32 %v768, %v770
    %v772 = vadd.f32 %v768, %v771
    %vm773 = vweird.f32 %v669
    %vm774 = vweird.f32 %v768
    %vm775 = vmor %vm773, %vm774
    %v776 = vsel %vm775, %v768, %v772
    %v777 = vand.u32 2147483647, %v669
    %vm778 = vcmp.eq.f32.partialorder %v777, 8.507059e+37
    %v779 = vand.u32 %v669, 2147483648
    %v780 = vor.u32 1.1754944e-38, %v779
    %v781 = vsel %vm778, %v780, %v776
    %v782 = vrcp.pop %v671
    %v783 = vmul.f32 %v671, %v782
    %v784 = vsub.f32 1.0, %v783
    %v785 = vmul.f32 %v782, %v784
    %v786 = vadd.f32 %v782, %v785
    %vm787 = vweird.f32 %v671
    %vm788 = vweird.f32 %v782
    %vm789 = vmor %vm787, %vm788
    %v790 = vsel %vm789, %v782, %v786
    %v791 = vand.u32 2147483647, %v671
    %vm792 = vcmp.eq.f32.partialorder %v791, 8.507059e+37
    %v793 = vand.u32 %v671, 2147483648
    %v794 = vor.u32 1.1754944e-38, %v793
    %v795 = vsel %vm792, %v794, %v790
    %v796 = vrcp.pop %v673
    %v797 = vmul.f32 %v673, %v796
    %v798 = vsub.f32 1.0, %v797
    %v799 = vmul.f32 %v796, %v798
    %v800 = vadd.f32 %v796, %v799
    %vm801 = vweird.f32 %v673
    %vm802 = vweird.f32 %v796
    %vm803 = vmor %vm801, %vm802
    %v804 = vsel %vm803, %v796, %v800
    %v805 = vand.u32 2147483647, %v673
    %vm806 = vcmp.eq.f32.partialorder %v805, 8.507059e+37
    %v807 = vand.u32 %v673, 2147483648
    %v808 = vor.u32 1.1754944e-38, %v807
    %v809 = vsel %vm806, %v808, %v804
    %v810 = vrcp.pop %v675
    %v811 = vmul.f32 %v675, %v810
    %v812 = vsub.f32 1.0, %v811
    %v813 = vmul.f32 %v810, %v812
    %v814 = vadd.f32 %v810, %v813
    %vm815 = vweird.f32 %v675
    %vm816 = vweird.f32 %v810
    %vm817 = vmor %vm815, %vm816
    %v818 = vsel %vm817, %v810, %v814
    %v819 = vand.u32 2147483647, %v675
    %vm820 = vcmp.eq.f32.partialorder %v819, 8.507059e+37
    %v821 = vand.u32 %v675, 2147483648
    %v822 = vor.u32 1.1754944e-38, %v821
    %v823 = vsel %vm820, %v822, %v818
    %v824 = vrcp.pop %v677
    %v825 = vmul.f32 %v677, %v824
    %v826 = vsub.f32 1.0, %v825
    %v827 = vmul.f32 %v824, %v826
    %v828 = vadd.f32 %v824, %v827
    %vm829 = vweird.f32 %v677
    %vm830 = vweird.f32 %v824
    %vm831 = vmor %vm829, %vm830
    %v832 = vsel %vm831, %v824, %v828
    %v833 = vand.u32 2147483647, %v677
    %vm834 = vcmp.eq.f32.partialorder %v833, 8.507059e+37
    %v835 = vand.u32 %v677, 2147483648
    %v836 = vor.u32 1.1754944e-38, %v835
    %v837 = vsel %vm834, %v836, %v832
    %v838 = vrcp.pop %v679
    %v839 = vmul.f32 %v679, %v838
    %v840 = vsub.f32 1.0, %v839
    %v841 = vmul.f32 %v838, %v840
    %v842 = vadd.f32 %v838, %v841
    %vm843 = vweird.f32 %v679
    %vm844 = vweird.f32 %v838
    %vm845 = vmor %vm843, %vm844
    %v846 = vsel %vm845, %v838, %v842
    %v847 = vand.u32 2147483647, %v679
    %vm848 = vcmp.eq.f32.partialorder %v847, 8.507059e+37
    %v849 = vand.u32 %v679, 2147483648
    %v850 = vor.u32 1.1754944e-38, %v849
    %v851 = vsel %vm848, %v850, %v846
    %v852 = vrcp.pop %v681
    %v853 = vmul.f32 %v681, %v852
    %v854 = vsub.f32 1.0, %v853
    %v855 = vmul.f32 %v852, %v854
    %v856 = vadd.f32 %v852, %v855
    %vm857 = vweird.f32 %v681
    %vm858 = vweird.f32 %v852
    %vm859 = vmor %vm857, %vm858
    %v860 = vsel %vm859, %v852, %v856
    %v861 = vand.u32 2147483647, %v681
    %vm862 = vcmp.eq.f32.partialorder %v861, 8.507059e+37
    %v863 = vand.u32 %v681, 2147483648
    %v864 = vor.u32 1.1754944e-38, %v863
    %v865 = vsel %vm862, %v864, %v860
    %v866 = vrcp.pop %v683
    %v867 = vmul.f32 %v683, %v866
    %v868 = vsub.f32 1.0, %v867
    %v869 = vmul.f32 %v866, %v868
    %v870 = vadd.f32 %v866, %v869
    %vm871 = vweird.f32 %v683
    %vm872 = vweird.f32 %v866
    %vm873 = vmor %vm871, %vm872
    %v874 = vsel %vm873, %v866, %v870
    %v875 = vand.u32 2147483647, %v683
    %vm876 = vcmp.eq.f32.partialorder %v875, 8.507059e+37
    %v877 = vand.u32 %v683, 2147483648
    %v878 = vor.u32 1.1754944e-38, %v877
    %v879 = vsel %vm876, %v878, %v874
    %v880 = vrcp.pop %v685
    %v881 = vmul.f32 %v685, %v880
    %v882 = vsub.f32 1.0, %v881
    %v883 = vmul.f32 %v880, %v882
    %v884 = vadd.f32 %v880, %v883
    %vm885 = vweird.f32 %v685
    %vm886 = vweird.f32 %v880
    %vm887 = vmor %vm885, %vm886
    %v888 = vsel %vm887, %v880, %v884
    %v889 = vand.u32 2147483647, %v685
    %vm890 = vcmp.eq.f32.partialorder %v889, 8.507059e+37
    %v891 = vand.u32 %v685, 2147483648
    %v892 = vor.u32 1.1754944e-38, %v891
    %v893 = vsel %vm890, %v892, %v888
    %v894 = vrcp.pop %v687
    %v895 = vmul.f32 %v687, %v894
    %v896 = vsub.f32 1.0, %v895
    %v897 = vmul.f32 %v894, %v896
    %v898 = vadd.f32 %v894, %v897
    %vm899 = vweird.f32 %v687
    %vm900 = vweird.f32 %v894
    %vm901 = vmor %vm899, %vm900
    %v902 = vsel %vm901, %v894, %v898
    %v903 = vand.u32 2147483647, %v687
    %vm904 = vcmp.eq.f32.partialorder %v903, 8.507059e+37
    %v905 = vand.u32 %v687, 2147483648
    %v906 = vor.u32 1.1754944e-38, %v905
    %v907 = vsel %vm904, %v906, %v902
    %v908 = vrcp.pop %v689
    %v909 = vmul.f32 %v689, %v908
    %v910 = vsub.f32 1.0, %v909
    %v911 = vmul.f32 %v908, %v910
    %v912 = vadd.f32 %v908, %v911
    %vm913 = vweird.f32 %v689
    %vm914 = vweird.f32 %v908
    %vm915 = vmor %vm913, %vm914
    %v916 = vsel %vm915, %v908, %v912
    %v917 = vand.u32 2147483647, %v689
    %vm918 = vcmp.eq.f32.partialorder %v917, 8.507059e+37
    %v919 = vand.u32 %v689, 2147483648
    %v920 = vor.u32 1.1754944e-38, %v919
    %v921 = vsel %vm918, %v920, %v916
    %v922 = vrcp.pop %v691
    %v923 = vmul.f32 %v691, %v922
    %v924 = vsub.f32 1.0, %v923
    %v925 = vmul.f32 %v922, %v924
    %v926 = vadd.f32 %v922, %v925
    %vm927 = vweird.f32 %v691
    %vm928 = vweird.f32 %v922
    %vm929 = vmor %vm927, %vm928
    %v930 = vsel %vm929, %v922, %v926
    %v931 = vand.u32 2147483647, %v691
    %vm932 = vcmp.eq.f32.partialorder %v931, 8.507059e+37
    %v933 = vand.u32 %v691, 2147483648
    %v934 = vor.u32 1.1754944e-38, %v933
    %v935 = vsel %vm932, %v934, %v930
    %v936 = vrcp.pop %v693
    %v937 = vmul.f32 %v693, %v936
    %v938 = vsub.f32 1.0, %v937
    %v939 = vmul.f32 %v936, %v938
    %v940 = vadd.f32 %v936, %v939
    %vm941 = vweird.f32 %v693
    %vm942 = vweird.f32 %v936
    %vm943 = vmor %vm941, %vm942
    %v944 = vsel %vm943, %v936, %v940
    %v945 = vand.u32 2147483647, %v693
    %vm946 = vcmp.eq.f32.partialorder %v945, 8.507059e+37
    %v947 = vand.u32 %v693, 2147483648
    %v948 = vor.u32 1.1754944e-38, %v947
    %v949 = vsel %vm946, %v948, %v944
    %v950 = vrcp.pop %v695
    %v951 = vmul.f32 %v695, %v950
    %v952 = vsub.f32 1.0, %v951
    %v953 = vmul.f32 %v950, %v952
    %v954 = vadd.f32 %v950, %v953
    %vm955 = vweird.f32 %v695
    %vm956 = vweird.f32 %v950
    %vm957 = vmor %vm955, %vm956
    %v958 = vsel %vm957, %v950, %v954
    %v959 = vand.u32 2147483647, %v695
    %vm960 = vcmp.eq.f32.partialorder %v959, 8.507059e+37
    %v961 = vand.u32 %v695, 2147483648
    %v962 = vor.u32 1.1754944e-38, %v961
    %v963 = vsel %vm960, %v962, %v958
    %v964 = vrcp.pop %v697
    %v965 = vmul.f32 %v697, %v964
    %v966 = vsub.f32 1.0, %v965
    %v967 = vmul.f32 %v964, %v966
    %v968 = vadd.f32 %v964, %v967
    %vm969 = vweird.f32 %v697
    %vm970 = vweird.f32 %v964
    %vm971 = vmor %vm969, %vm970
    %v972 = vsel %vm971, %v964, %v968
    %v973 = vand.u32 2147483647, %v697
    %vm974 = vcmp.eq.f32.partialorder %v973, 8.507059e+37
    %v975 = vand.u32 %v697, 2147483648
    %v976 = vor.u32 1.1754944e-38, %v975
    %v977 = vsel %vm974, %v976, %v972
    %v978 = vrcp.pop %v699
    %v979 = vmul.f32 %v699, %v978
    %v980 = vsub.f32 1.0, %v979
    %v981 = vmul.f32 %v978, %v980
    %v982 = vadd.f32 %v978, %v981
    %vm983 = vweird.f32 %v699
    %vm984 = vweird.f32 %v978
    %vm985 = vmor %vm983, %vm984
    %v986 = vsel %vm985, %v978, %v982
    %v987 = vand.u32 2147483647, %v699
    %vm988 = vcmp.eq.f32.partialorder %v987, 8.507059e+37
    %v989 = vand.u32 %v699, 2147483648
    %v990 = vor.u32 1.1754944e-38, %v989
    %v991 = vsel %vm988, %v990, %v986
    %v992 = vrcp.pop %v701
    %v993 = vmul.f32 %v701, %v992
    %v994 = vsub.f32 1.0, %v993
    %v995 = vmul.f32 %v992, %v994
    %v996 = vadd.f32 %v992, %v995
    %vm997 = vweird.f32 %v701
    %vm998 = vweird.f32 %v992
    %vm999 = vmor %vm997, %vm998
    %v1000 = vsel %vm999, %v992, %v996
    %v1001 = vand.u32 2147483647, %v701
    %vm1002 = vcmp.eq.f32.partialorder %v1001, 8.507059e+37
    %v1003 = vand.u32 %v701, 2147483648
    %v1004 = vor.u32 1.1754944e-38, %v1003
    %v1005 = vsel %vm1002, %v1004, %v1000
    %v1006 = vrcp.pop %v703
    %v1007 = vmul.f32 %v703, %v1006
    %v1008 = vsub.f32 1.0, %v1007
    %v1009 = vmul.f32 %v1006, %v1008
    %v1010 = vadd.f32 %v1006, %v1009
    %vm1011 = vweird.f32 %v703
    %vm1012 = vweird.f32 %v1006
    %vm1013 = vmor %vm1011, %vm1012
    %v1014 = vsel %vm1013, %v1006, %v1010
    %v1015 = vand.u32 2147483647, %v703
    %vm1016 = vcmp.eq.f32.partialorder %v1015, 8.507059e+37
    %v1017 = vand.u32 %v703, 2147483648
    %v1018 = vor.u32 1.1754944e-38, %v1017
    %v1019 = vsel %vm1016, %v1018, %v1014
    %v1020 = vrcp.pop %v705
    %v1021 = vmul.f32 %v705, %v1020
    %v1022 = vsub.f32 1.0, %v1021
    %v1023 = vmul.f32 %v1020, %v1022
    %v1024 = vadd.f32 %v1020, %v1023
    %vm1025 = vweird.f32 %v705
    %vm1026 = vweird.f32 %v1020
    %vm1027 = vmor %vm1025, %vm1026
    %v1028 = vsel %vm1027, %v1020, %v1024
    %v1029 = vand.u32 2147483647, %v705
    %vm1030 = vcmp.eq.f32.partialorder %v1029, 8.507059e+37
    %v1031 = vand.u32 %v705, 2147483648
    %v1032 = vor.u32 1.1754944e-38, %v1031
    %v1033 = vsel %vm1030, %v1032, %v1028
    %v1034 = vrcp.pop %v707
    %v1035 = vmul.f32 %v707, %v1034
    %v1036 = vsub.f32 1.0, %v1035
    %v1037 = vmul.f32 %v1034, %v1036
    %v1038 = vadd.f32 %v1034, %v1037
    %vm1039 = vweird.f32 %v707
    %vm1040 = vweird.f32 %v1034
    %vm1041 = vmor %vm1039, %vm1040
    %v1042 = vsel %vm1041, %v1034, %v1038
    %v1043 = vand.u32 2147483647, %v707
    %vm1044 = vcmp.eq.f32.partialorder %v1043, 8.507059e+37
    %v1045 = vand.u32 %v707, 2147483648
    %v1046 = vor.u32 1.1754944e-38, %v1045
    %v1047 = vsel %vm1044, %v1046, %v1042
    %v1048 = vrcp.pop %v709
    %v1049 = vmul.f32 %v709, %v1048
    %v1050 = vsub.f32 1.0, %v1049
    %v1051 = vmul.f32 %v1048, %v1050
    %v1052 = vadd.f32 %v1048, %v1051
    %vm1053 = vweird.f32 %v709
    %vm1054 = vweird.f32 %v1048
    %vm1055 = vmor %vm1053, %vm1054
    %v1056 = vsel %vm1055, %v1048, %v1052
    %v1057 = vand.u32 2147483647, %v709
    %vm1058 = vcmp.eq.f32.partialorder %v1057, 8.507059e+37
    %v1059 = vand.u32 %v709, 2147483648
    %v1060 = vor.u32 1.1754944e-38, %v1059
    %v1061 = vsel %vm1058, %v1060, %v1056
    %v1062 = vrcp.pop %v711
    %v1063 = vmul.f32 %v711, %v1062
    %v1064 = vsub.f32 1.0, %v1063
    %v1065 = vmul.f32 %v1062, %v1064
    %v1066 = vadd.f32 %v1062, %v1065
    %vm1067 = vweird.f32 %v711
    %vm1068 = vweird.f32 %v1062
    %vm1069 = vmor %vm1067, %vm1068
    %v1070 = vsel %vm1069, %v1062, %v1066
    %v1071 = vand.u32 2147483647, %v711
    %vm1072 = vcmp.eq.f32.partialorder %v1071, 8.507059e+37
    %v1073 = vand.u32 %v711, 2147483648
    %v1074 = vor.u32 1.1754944e-38, %v1073
    %v1075 = vsel %vm1072, %v1074, %v1070
    %v1076 = vrcp.pop %v713
    %v1077 = vmul.f32 %v713, %v1076
    %v1078 = vsub.f32 1.0, %v1077
    %v1079 = vmul.f32 %v1076, %v1078
    %v1080 = vadd.f32 %v1076, %v1079
    %vm1081 = vweird.f32 %v713
    %vm1082 = vweird.f32 %v1076
    %vm1083 = vmor %vm1081, %vm1082
    %v1084 = vsel %vm1083, %v1076, %v1080
    %v1085 = vand.u32 2147483647, %v713
    %vm1086 = vcmp.eq.f32.partialorder %v1085, 8.507059e+37
    %v1087 = vand.u32 %v713, 2147483648
    %v1088 = vor.u32 1.1754944e-38, %v1087
    %v1089 = vsel %vm1086, %v1088, %v1084
    %v1090 = vrcp.pop %v715
    %v1091 = vmul.f32 %v715, %v1090
    %v1092 = vsub.f32 1.0, %v1091
    %v1093 = vmul.f32 %v1090, %v1092
    %v1094 = vadd.f32 %v1090, %v1093
    %vm1095 = vweird.f32 %v715
    %vm1096 = vweird.f32 %v1090
    %vm1097 = vmor %vm1095, %vm1096
    %v1098 = vsel %vm1097, %v1090, %v1094
    %v1099 = vand.u32 2147483647, %v715
    %vm1100 = vcmp.eq.f32.partialorder %v1099, 8.507059e+37
    %v1101 = vand.u32 %v715, 2147483648
    %v1102 = vor.u32 1.1754944e-38, %v1101
    %v1103 = vsel %vm1100, %v1102, %v1098
    %v1104 = vrcp.pop %v717
    %v1105 = vmul.f32 %v717, %v1104
    %v1106 = vsub.f32 1.0, %v1105
    %v1107 = vmul.f32 %v1104, %v1106
    %v1108 = vadd.f32 %v1104, %v1107
    %vm1109 = vweird.f32 %v717
    %vm1110 = vweird.f32 %v1104
    %vm1111 = vmor %vm1109, %vm1110
    %v1112 = vsel %vm1111, %v1104, %v1108
    %v1113 = vand.u32 2147483647, %v717
    %vm1114 = vcmp.eq.f32.partialorder %v1113, 8.507059e+37
    %v1115 = vand.u32 %v717, 2147483648
    %v1116 = vor.u32 1.1754944e-38, %v1115
    %v1117 = vsel %vm1114, %v1116, %v1112
    %v1118 = vrcp.pop %v719
    %v1119 = vmul.f32 %v719, %v1118
    %v1120 = vsub.f32 1.0, %v1119
    %v1121 = vmul.f32 %v1118, %v1120
    %v1122 = vadd.f32 %v1118, %v1121
    %vm1123 = vweird.f32 %v719
    %vm1124 = vweird.f32 %v1118
    %vm1125 = vmor %vm1123, %vm1124
    %v1126 = vsel %vm1125, %v1118, %v1122
    %v1127 = vand.u32 2147483647, %v719
    %vm1128 = vcmp.eq.f32.partialorder %v1127, 8.507059e+37
    %v1129 = vand.u32 %v719, 2147483648
    %v1130 = vor.u32 1.1754944e-38, %v1129
    %v1131 = vsel %vm1128, %v1130, %v1126
    %v1132 = vrcp.pop %v721
    %v1133 = vmul.f32 %v721, %v1132
    %v1134 = vsub.f32 1.0, %v1133
    %v1135 = vmul.f32 %v1132, %v1134
    %v1136 = vadd.f32 %v1132, %v1135
    %vm1137 = vweird.f32 %v721
    %vm1138 = vweird.f32 %v1132
    %vm1139 = vmor %vm1137, %vm1138
    %v1140 = vsel %vm1139, %v1132, %v1136
    %v1141 = vand.u32 2147483647, %v721
    %vm1142 = vcmp.eq.f32.partialorder %v1141, 8.507059e+37
    %v1143 = vand.u32 %v721, 2147483648
    %v1144 = vor.u32 1.1754944e-38, %v1143
    %v1145 = vsel %vm1142, %v1144, %v1140
    %v1146 = vrcp.pop %v723
    %v1147 = vmul.f32 %v723, %v1146
    %v1148 = vsub.f32 1.0, %v1147
    %v1149 = vmul.f32 %v1146, %v1148
    %v1150 = vadd.f32 %v1146, %v1149
    %vm1151 = vweird.f32 %v723
    %vm1152 = vweird.f32 %v1146
    %vm1153 = vmor %vm1151, %vm1152
    %v1154 = vsel %vm1153, %v1146, %v1150
    %v1155 = vand.u32 2147483647, %v723
    %vm1156 = vcmp.eq.f32.partialorder %v1155, 8.507059e+37
    %v1157 = vand.u32 %v723, 2147483648
    %v1158 = vor.u32 1.1754944e-38, %v1157
    %v1159 = vsel %vm1156, %v1158, %v1154
    %v1160 = vrcp.pop %v725
    %v1161 = vmul.f32 %v725, %v1160
    %v1162 = vsub.f32 1.0, %v1161
    %v1163 = vmul.f32 %v1160, %v1162
    %v1164 = vadd.f32 %v1160, %v1163
    %vm1165 = vweird.f32 %v725
    %vm1166 = vweird.f32 %v1160
    %vm1167 = vmor %vm1165, %vm1166
    %v1168 = vsel %vm1167, %v1160, %v1164
    %v1169 = vand.u32 2147483647, %v725
    %vm1170 = vcmp.eq.f32.partialorder %v1169, 8.507059e+37
    %v1171 = vand.u32 %v725, 2147483648
    %v1172 = vor.u32 1.1754944e-38, %v1171
    %v1173 = vsel %vm1170, %v1172, %v1168
    %v1174 = vmul.f32 %v599, %v739
    %v1175 = vmul.f32 %v601, %v753
    %v1176 = vmul.f32 %v603, %v767
    %v1177 = vmul.f32 %v605, %v781
    %v1178 = vmul.f32 %v607, %v795
    %v1179 = vmul.f32 %v609, %v809
    %v1180 = vmul.f32 %v611, %v823
    %v1181 = vmul.f32 %v613, %v837
    %v1182 = vmul.f32 %v615, %v851
    %v1183 = vmul.f32 %v617, %v865
    %v1184 = vmul.f32 %v619, %v879
    %v1185 = vmul.f32 %v621, %v893
    %v1186 = vmul.f32 %v623, %v907
    %v1187 = vmul.f32 %v625, %v921
    %v1188 = vmul.f32 %v627, %v935
    %v1189 = vmul.f32 %v629, %v949
    %v1190 = vmul.f32 %v631, %v963
    %v1191 = vmul.f32 %v633, %v977
    %v1192 = vmul.f32 %v635, %v991
    %v1193 = vmul.f32 %v637, %v1005
    %v1194 = vmul.f32 %v639, %v1019
    %v1195 = vmul.f32 %v641, %v1033
    %v1196 = vmul.f32 %v643, %v1047
    %v1197 = vmul.f32 %v645, %v1061
    %v1198 = vmul.f32 %v647, %v1075
    %v1199 = vmul.f32 %v649, %v1089
    %v1200 = vmul.f32 %v651, %v1103
    %v1201 = vmul.f32 %v653, %v1117
    %v1202 = vmul.f32 %v655, %v1131
    %v1203 = vmul.f32 %v657, %v1145
    %v1204 = vmul.f32 %v659, %v1159
    %v1205 = vmul.f32 %v661, %v1173
    %1206 = vst [vmem:[#allocation6] sm:$0xff] %v1174
    %1207 = vst [vmem:[#allocation6 + $0x8] sm:$0xff] %v1175
    %1208 = vst [vmem:[#allocation6 + $0x10] sm:$0xff] %v1176
    %1209 = vst [vmem:[#allocation6 + $0x18] sm:$0xff] %v1177
    %1210 = vst [vmem:[#allocation6 + $0x20] sm:$0xff] %v1178
    %1211 = vst [vmem:[#allocation6 + $0x28] sm:$0xff] %v1179
    %1212 = vst [vmem:[#allocation6 + $0x30] sm:$0xff] %v1180
    %1213 = vst [vmem:[#allocation6 + $0x38] sm:$0xff] %v1181
    %1214 = vst [vmem:[#allocation6 + $0x40] sm:$0xff] %v1182
    %1215 = vst [vmem:[#allocation6 + $0x48] sm:$0xff] %v1183
    %1216 = vst [vmem:[#allocation6 + $0x50] sm:$0xff] %v1184
    %1217 = vst [vmem:[#allocation6 + $0x58] sm:$0xff] %v1185
    %1218 = vst [vmem:[#allocation6 + $0x60] sm:$0xff] %v1186
    %1219 = vst [vmem:[#allocation6 + $0x68] sm:$0xff] %v1187
    %1220 = vst [vmem:[#allocation6 + $0x70] sm:$0xff] %v1188
    %1221 = vst [vmem:[#allocation6 + $0x78] sm:$0xff] %v1189
    %1222 = vst [vmem:[#allocation6 + $0x80] sm:$0xff] %v1190
    %1223 = vst [vmem:[#allocation6 + $0x88] sm:$0xff] %v1191
    %1224 = vst [vmem:[#allocation6 + $0x90] sm:$0xff] %v1192
    %1225 = vst [vmem:[#allocation6 + $0x98] sm:$0xff] %v1193
    %1226 = vst [vmem:[#allocation6 + $0xa0] sm:$0xff] %v1194
    %1227 = vst [vmem:[#allocation6 + $0xa8] sm:$0xff] %v1195
    %1228 = vst [vmem:[#allocation6 + $0xb0] sm:$0xff] %v1196
    %1229 = vst [vmem:[#allocation6 + $0xb8] sm:$0xff] %v1197
    %1230 = vst [vmem:[#allocation6 + $0xc0] sm:$0xff] %v1198
    %1231 = vst [vmem:[#allocation6 + $0xc8] sm:$0xff] %v1199
    %1232 = vst [vmem:[#allocation6 + $0xd0] sm:$0xff] %v1200
    %1233 = vst [vmem:[#allocation6 + $0xd8] sm:$0xff] %v1201
    %1234 = vst [vmem:[#allocation6 + $0xe0] sm:$0xff] %v1202
    %1235 = vst [vmem:[#allocation6 + $0xe8] sm:$0xff] %v1203
    %1236 = vst [vmem:[#allocation6 + $0xf0] sm:$0xff] %v1204
    %1237 = vst [vmem:[#allocation6 + $0xf8] sm:$0xff] %v1205
    %v1238 = vld [vmem:[%s5] sm:$0xff]
    %v1239 = vld [vmem:[%s5 + $0x8] sm:$0xff]
    %v1240 = vld [vmem:[%s5 + $0x10] sm:$0xff]
    %v1241 = vld [vmem:[%s5 + $0x18] sm:$0xff]
    %v1242 = vld [vmem:[%s5 + $0x20] sm:$0xff]
    %v1243 = vld [vmem:[%s5 + $0x28] sm:$0xff]
    %v1244 = vld [vmem:[%s5 + $0x30] sm:$0xff]
    %v1245 = vld [vmem:[%s5 + $0x38] sm:$0xff]
    %v1246 = vld [vmem:[%s5 + $0x40] sm:$0xff]
    %v1247 = vld [vmem:[%s5 + $0x48] sm:$0xff]
    %v1248 = vld [vmem:[%s5 + $0x50] sm:$0xff]
    %v1249 = vld [vmem:[%s5 + $0x58] sm:$0xff]
    %v1250 = vld [vmem:[%s5 + $0x60] sm:$0xff]
    %v1251 = vld [vmem:[%s5 + $0x68] sm:$0xff]
    %v1252 = vld [vmem:[%s5 + $0x70] sm:$0xff]
    %v1253 = vld [vmem:[%s5 + $0x78] sm:$0xff]
    %v1254 = vld [vmem:[%s6] sm:$0x1]
    %v1256 = vperm.slane %v1254, 0
    %1258 = vmatpush.msra.mxu0 %v1253
    %1259 = vmatpush.msra.mxu0 %v1252
    %1260 = vmatpush.msra.mxu0 %v1251
    %1261 = vmatpush.msra.mxu0 %v1250
    %1262 = vmatpush.msra.mxu0 %v1249
    %1263 = vmatpush.msra.mxu0 %v1248
    %1264 = vmatpush.msra.mxu0 %v1247
    %1265 = vmatpush.msra.mxu0 %v1246
    %1266 = vmatpush.msra.mxu0 %v1245
    %1267 = vmatpush.msra.mxu0 %v1244
    %1268 = vmatpush.msra.mxu0 %v1243
    %1269 = vmatpush.msra.mxu0 %v1242
    %1270 = vmatpush.msra.mxu0 %v1241
    %1271 = vmatpush.msra.mxu0 %v1240
    %1272 = vmatpush.msra.mxu0 %v1239
    %1273 = vmatpush.msra.mxu0 %v1238
    %1274 = vmatmul.f32.gmra.mxu0 %v1174
    %v1275 = vpop.f32.mrf.mxu0
    %v1276 = vadd.f32 %v1256, %v1275
    %1277 = vmatmul.f32.gmra.mxu0 %v1175
    %v1278 = vpop.f32.mrf.mxu0
    %v1279 = vadd.f32 %v1256, %v1278
    %1280 = vmatmul.f32.gmra.mxu0 %v1176
    %v1281 = vpop.f32.mrf.mxu0
    %v1282 = vadd.f32 %v1256, %v1281
    %1283 = vmatmul.f32.gmra.mxu0 %v1177
    %v1284 = vpop.f32.mrf.mxu0
    %v1285 = vadd.f32 %v1256, %v1284
    %1286 = vmatmul.f32.gmra.mxu0 %v1178
    %v1287 = vpop.f32.mrf.mxu0
    %v1288 = vadd.f32 %v1256, %v1287
    %1289 = vmatmul.f32.gmra.mxu0 %v1179
    %v1290 = vpop.f32.mrf.mxu0
    %v1291 = vadd.f32 %v1256, %v1290
    %1292 = vmatmul.f32.gmra.mxu0 %v1180
    %v1293 = vpop.f32.mrf.mxu0
    %v1294 = vadd.f32 %v1256, %v1293
    %1295 = vmatmul.f32.gmra.mxu0 %v1181
    %v1296 = vpop.f32.mrf.mxu0
    %v1297 = vadd.f32 %v1256, %v1296
    %1298 = vmatmul.f32.gmra.mxu0 %v1182
    %v1299 = vpop.f32.mrf.mxu0
    %v1300 = vadd.f32 %v1256, %v1299
    %1301 = vmatmul.f32.gmra.mxu0 %v1183
    %v1302 = vpop.f32.mrf.mxu0
    %v1303 = vadd.f32 %v1256, %v1302
    %1304 = vmatmul.f32.gmra.mxu0 %v1184
    %v1305 = vpop.f32.mrf.mxu0
    %v1306 = vadd.f32 %v1256, %v1305
    %1307 = vmatmul.f32.gmra.mxu0 %v1185
    %v1308 = vpop.f32.mrf.mxu0
    %v1309 = vadd.f32 %v1256, %v1308
    %1310 = vmatmul.f32.gmra.mxu0 %v1186
    %v1311 = vpop.f32.mrf.mxu0
    %v1312 = vadd.f32 %v1256, %v1311
    %1313 = vmatmul.f32.gmra.mxu0 %v1187
    %v1314 = vpop.f32.mrf.mxu0
    %v1315 = vadd.f32 %v1256, %v1314
    %1316 = vmatmul.f32.gmra.mxu0 %v1188
    %v1317 = vpop.f32.mrf.mxu0
    %v1318 = vadd.f32 %v1256, %v1317
    %1319 = vmatmul.f32.gmra.mxu0 %v1189
    %v1320 = vpop.f32.mrf.mxu0
    %v1321 = vadd.f32 %v1256, %v1320
    %1322 = vmatmul.f32.gmra.mxu0 %v1190
    %v1323 = vpop.f32.mrf.mxu0
    %v1324 = vadd.f32 %v1256, %v1323
    %1325 = vmatmul.f32.gmra.mxu0 %v1191
    %v1326 = vpop.f32.mrf.mxu0
    %v1327 = vadd.f32 %v1256, %v1326
    %1328 = vmatmul.f32.gmra.mxu0 %v1192
    %v1329 = vpop.f32.mrf.mxu0
    %v1330 = vadd.f32 %v1256, %v1329
    %1331 = vmatmul.f32.gmra.mxu0 %v1193
    %v1332 = vpop.f32.mrf.mxu0
    %v1333 = vadd.f32 %v1256, %v1332
    %1334 = vmatmul.f32.gmra.mxu0 %v1194
    %v1335 = vpop.f32.mrf.mxu0
    %v1336 = vadd.f32 %v1256, %v1335
    %1337 = vmatmul.f32.gmra.mxu0 %v1195
    %v1338 = vpop.f32.mrf.mxu0
    %v1339 = vadd.f32 %v1256, %v1338
    %1340 = vmatmul.f32.gmra.mxu0 %v1196
    %v1341 = vpop.f32.mrf.mxu0
    %v1342 = vadd.f32 %v1256, %v1341
    %1343 = vmatmul.f32.gmra.mxu0 %v1197
    %v1344 = vpop.f32.mrf.mxu0
    %v1345 = vadd.f32 %v1256, %v1344
    %1346 = vmatmul.f32.gmra.mxu0 %v1198
    %v1347 = vpop.f32.mrf.mxu0
    %v1348 = vadd.f32 %v1256, %v1347
    %1349 = vmatmul.f32.gmra.mxu0 %v1199
    %v1350 = vpop.f32.mrf.mxu0
    %v1351 = vadd.f32 %v1256, %v1350
    %1352 = vmatmul.f32.gmra.mxu0 %v1200
    %v1353 = vpop.f32.mrf.mxu0
    %v1354 = vadd.f32 %v1256, %v1353
    %1355 = vmatmul.f32.gmra.mxu0 %v1201
    %v1356 = vpop.f32.mrf.mxu0
    %v1357 = vadd.f32 %v1256, %v1356
    %1358 = vmatmul.f32.gmra.mxu0 %v1202
    %v1359 = vpop.f32.mrf.mxu0
    %v1360 = vadd.f32 %v1256, %v1359
    %1361 = vmatmul.f32.gmra.mxu0 %v1203
    %v1362 = vpop.f32.mrf.mxu0
    %v1363 = vadd.f32 %v1256, %v1362
    %1364 = vmatmul.f32.gmra.mxu0 %v1204
    %v1365 = vpop.f32.mrf.mxu0
    %v1366 = vadd.f32 %v1256, %v1365
    %1367 = vmatmul.f32.gmra.mxu0 %v1205
    %v1368 = vpop.f32.mrf.mxu0
    %v1369 = vadd.f32 %v1256, %v1368
    %1370 = vdwg.mxu0
    %v1371 = vmax.f32 %v1276, 0.0
    %v1372 = vmax.f32 %v1279, 0.0
    %v1373 = vmax.f32 %v1282, 0.0
    %v1374 = vmax.f32 %v1285, 0.0
    %v1375 = vmax.f32 %v1288, 0.0
    %v1376 = vmax.f32 %v1291, 0.0
    %v1377 = vmax.f32 %v1294, 0.0
    %v1378 = vmax.f32 %v1297, 0.0
    %v1379 = vmax.f32 %v1300, 0.0
    %v1380 = vmax.f32 %v1303, 0.0
    %v1381 = vmax.f32 %v1306, 0.0
    %v1382 = vmax.f32 %v1309, 0.0
    %v1383 = vmax.f32 %v1312, 0.0
    %v1384 = vmax.f32 %v1315, 0.0
    %v1385 = vmax.f32 %v1318, 0.0
    %v1386 = vmax.f32 %v1321, 0.0
    %v1387 = vmax.f32 %v1324, 0.0
    %v1388 = vmax.f32 %v1327, 0.0
    %v1389 = vmax.f32 %v1330, 0.0
    %v1390 = vmax.f32 %v1333, 0.0
    %v1391 = vmax.f32 %v1336, 0.0
    %v1392 = vmax.f32 %v1339, 0.0
    %v1393 = vmax.f32 %v1342, 0.0
    %v1394 = vmax.f32 %v1345, 0.0
    %v1395 = vmax.f32 %v1348, 0.0
    %v1396 = vmax.f32 %v1351, 0.0
    %v1397 = vmax.f32 %v1354, 0.0
    %v1398 = vmax.f32 %v1357, 0.0
    %v1399 = vmax.f32 %v1360, 0.0
    %v1400 = vmax.f32 %v1363, 0.0
    %v1401 = vmax.f32 %v1366, 0.0
    %v1402 = vmax.f32 %v1369, 0.0
    %v1403 = vld [vmem:[#allocation2] sm:$0xff]
    %v1404 = vld [vmem:[#allocation2 + $0x8] sm:$0xff]
    %v1405 = vld [vmem:[#allocation2 + $0x10] sm:$0xff]
    %v1406 = vld [vmem:[#allocation2 + $0x18] sm:$0xff]
    %v1407 = vld [vmem:[#allocation2 + $0x20] sm:$0xff]
    %v1408 = vld [vmem:[#allocation2 + $0x28] sm:$0xff]
    %v1409 = vld [vmem:[#allocation2 + $0x30] sm:$0xff]
    %v1410 = vld [vmem:[#allocation2 + $0x38] sm:$0xff]
    %v1411 = vld [vmem:[#allocation2 + $0x40] sm:$0xff]
    %v1412 = vld [vmem:[#allocation2 + $0x48] sm:$0xff]
    %v1413 = vld [vmem:[#allocation2 + $0x50] sm:$0xff]
    %v1414 = vld [vmem:[#allocation2 + $0x58] sm:$0xff]
    %v1415 = vld [vmem:[#allocation2 + $0x60] sm:$0xff]
    %v1416 = vld [vmem:[#allocation2 + $0x68] sm:$0xff]
    %v1417 = vld [vmem:[#allocation2 + $0x70] sm:$0xff]
    %v1418 = vld [vmem:[#allocation2 + $0x78] sm:$0xff]
    %v1419 = vld [vmem:[%s8] sm:$0x1]
    %v1421 = vperm.slane %v1419, 0
    %1423 = vmatpush.msra.mxu0 %v1418
    %1424 = vmatpush.msra.mxu0 %v1417
    %1425 = vmatpush.msra.mxu0 %v1416
    %1426 = vmatpush.msra.mxu0 %v1415
    %1427 = vmatpush.msra.mxu0 %v1414
    %1428 = vmatpush.msra.mxu0 %v1413
    %1429 = vmatpush.msra.mxu0 %v1412
    %1430 = vmatpush.msra.mxu0 %v1411
    %1431 = vmatpush.msra.mxu0 %v1410
    %1432 = vmatpush.msra.mxu0 %v1409
    %1433 = vmatpush.msra.mxu0 %v1408
    %1434 = vmatpush.msra.mxu0 %v1407
    %1435 = vmatpush.msra.mxu0 %v1406
    %1436 = vmatpush.msra.mxu0 %v1405
    %1437 = vmatpush.msra.mxu0 %v1404
    %1438 = vmatpush.msra.mxu0 %v1403
    %1439 = vmatmul.f32.gmra.mxu0 %v1371
    %v1440 = vpop.f32.mrf.mxu0
    %v1441 = vadd.f32 %v1421, %v1440
    %1442 = vmatmul.f32.gmra.mxu0 %v1372
    %v1443 = vpop.f32.mrf.mxu0
    %v1444 = vadd.f32 %v1421, %v1443
    %1445 = vmatmul.f32.gmra.mxu0 %v1373
    %v1446 = vpop.f32.mrf.mxu0
    %v1447 = vadd.f32 %v1421, %v1446
    %1448 = vmatmul.f32.gmra.mxu0 %v1374
    %v1449 = vpop.f32.mrf.mxu0
    %v1450 = vadd.f32 %v1421, %v1449
    %1451 = vmatmul.f32.gmra.mxu0 %v1375
    %v1452 = vpop.f32.mrf.mxu0
    %v1453 = vadd.f32 %v1421, %v1452
    %1454 = vmatmul.f32.gmra.mxu0 %v1376
    %v1455 = vpop.f32.mrf.mxu0
    %v1456 = vadd.f32 %v1421, %v1455
    %1457 = vmatmul.f32.gmra.mxu0 %v1377
    %v1458 = vpop.f32.mrf.mxu0
    %v1459 = vadd.f32 %v1421, %v1458
    %1460 = vmatmul.f32.gmra.mxu0 %v1378
    %v1461 = vpop.f32.mrf.mxu0
    %v1462 = vadd.f32 %v1421, %v1461
    %1463 = vmatmul.f32.gmra.mxu0 %v1379
    %v1464 = vpop.f32.mrf.mxu0
    %v1465 = vadd.f32 %v1421, %v1464
    %1466 = vmatmul.f32.gmra.mxu0 %v1380
    %v1467 = vpop.f32.mrf.mxu0
    %v1468 = vadd.f32 %v1421, %v1467
    %1469 = vmatmul.f32.gmra.mxu0 %v1381
    %v1470 = vpop.f32.mrf.mxu0
    %v1471 = vadd.f32 %v1421, %v1470
    %1472 = vmatmul.f32.gmra.mxu0 %v1382
    %v1473 = vpop.f32.mrf.mxu0
    %v1474 = vadd.f32 %v1421, %v1473
    %1475 = vmatmul.f32.gmra.mxu0 %v1383
    %v1476 = vpop.f32.mrf.mxu0
    %v1477 = vadd.f32 %v1421, %v1476
    %1478 = vmatmul.f32.gmra.mxu0 %v1384
    %v1479 = vpop.f32.mrf.mxu0
    %v1480 = vadd.f32 %v1421, %v1479
    %1481 = vmatmul.f32.gmra.mxu0 %v1385
    %v1482 = vpop.f32.mrf.mxu0
    %v1483 = vadd.f32 %v1421, %v1482
    %1484 = vmatmul.f32.gmra.mxu0 %v1386
    %v1485 = vpop.f32.mrf.mxu0
    %v1486 = vadd.f32 %v1421, %v1485
    %1487 = vmatmul.f32.gmra.mxu0 %v1387
    %v1488 = vpop.f32.mrf.mxu0
    %v1489 = vadd.f32 %v1421, %v1488
    %1490 = vmatmul.f32.gmra.mxu0 %v1388
    %v1491 = vpop.f32.mrf.mxu0
    %v1492 = vadd.f32 %v1421, %v1491
    %1493 = vmatmul.f32.gmra.mxu0 %v1389
    %v1494 = vpop.f32.mrf.mxu0
    %v1495 = vadd.f32 %v1421, %v1494
    %1496 = vmatmul.f32.gmra.mxu0 %v1390
    %v1497 = vpop.f32.mrf.mxu0
    %v1498 = vadd.f32 %v1421, %v1497
    %1499 = vmatmul.f32.gmra.mxu0 %v1391
    %v1500 = vpop.f32.mrf.mxu0
    %v1501 = vadd.f32 %v1421, %v1500
    %1502 = vmatmul.f32.gmra.mxu0 %v1392
    %v1503 = vpop.f32.mrf.mxu0
    %v1504 = vadd.f32 %v1421, %v1503
    %1505 = vmatmul.f32.gmra.mxu0 %v1393
    %v1506 = vpop.f32.mrf.mxu0
    %v1507 = vadd.f32 %v1421, %v1506
    %1508 = vmatmul.f32.gmra.mxu0 %v1394
    %v1509 = vpop.f32.mrf.mxu0
    %v1510 = vadd.f32 %v1421, %v1509
    %1511 = vmatmul.f32.gmra.mxu0 %v1395
    %v1512 = vpop.f32.mrf.mxu0
    %v1513 = vadd.f32 %v1421, %v1512
    %1514 = vmatmul.f32.gmra.mxu0 %v1396
    %v1515 = vpop.f32.mrf.mxu0
    %v1516 = vadd.f32 %v1421, %v1515
    %1517 = vmatmul.f32.gmra.mxu0 %v1397
    %v1518 = vpop.f32.mrf.mxu0
    %v1519 = vadd.f32 %v1421, %v1518
    %1520 = vmatmul.f32.gmra.mxu0 %v1398
    %v1521 = vpop.f32.mrf.mxu0
    %v1522 = vadd.f32 %v1421, %v1521
    %1523 = vmatmul.f32.gmra.mxu0 %v1399
    %v1524 = vpop.f32.mrf.mxu0
    %v1525 = vadd.f32 %v1421, %v1524
    %1526 = vmatmul.f32.gmra.mxu0 %v1400
    %v1527 = vpop.f32.mrf.mxu0
    %v1528 = vadd.f32 %v1421, %v1527
    %1529 = vmatmul.f32.gmra.mxu0 %v1401
    %v1530 = vpop.f32.mrf.mxu0
    %v1531 = vadd.f32 %v1421, %v1530
    %1532 = vmatmul.f32.gmra.mxu0 %v1402
    %v1533 = vpop.f32.mrf.mxu0
    %v1534 = vadd.f32 %v1421, %v1533
    %1535 = vdwg.mxu0
    %1536 = vst [vmem:[#allocation5] sm:$0xff] %v1441
    %1537 = vst [vmem:[#allocation5 + $0x8] sm:$0xff] %v1444
    %1538 = vst [vmem:[#allocation5 + $0x10] sm:$0xff] %v1447
    %1539 = vst [vmem:[#allocation5 + $0x18] sm:$0xff] %v1450
    %1540 = vst [vmem:[#allocation5 + $0x20] sm:$0xff] %v1453
    %1541 = vst [vmem:[#allocation5 + $0x28] sm:$0xff] %v1456
    %1542 = vst [vmem:[#allocation5 + $0x30] sm:$0xff] %v1459
    %1543 = vst [vmem:[#allocation5 + $0x38] sm:$0xff] %v1462
    %1544 = vst [vmem:[#allocation5 + $0x40] sm:$0xff] %v1465
    %1545 = vst [vmem:[#allocation5 + $0x48] sm:$0xff] %v1468
    %1546 = vst [vmem:[#allocation5 + $0x50] sm:$0xff] %v1471
    %1547 = vst [vmem:[#allocation5 + $0x58] sm:$0xff] %v1474
    %1548 = vst [vmem:[#allocation5 + $0x60] sm:$0xff] %v1477
    %1549 = vst [vmem:[#allocation5 + $0x68] sm:$0xff] %v1480
    %1550 = vst [vmem:[#allocation5 + $0x70] sm:$0xff] %v1483
    %1551 = vst [vmem:[#allocation5 + $0x78] sm:$0xff] %v1486
    %1552 = vst [vmem:[#allocation5 + $0x80] sm:$0xff] %v1489
    %1553 = vst [vmem:[#allocation5 + $0x88] sm:$0xff] %v1492
    %1554 = vst [vmem:[#allocation5 + $0x90] sm:$0xff] %v1495
    %1555 = vst [vmem:[#allocation5 + $0x98] sm:$0xff] %v1498
    %1556 = vst [vmem:[#allocation5 + $0xa0] sm:$0xff] %v1501
    %1557 = vst [vmem:[#allocation5 + $0xa8] sm:$0xff] %v1504
    %1558 = vst [vmem:[#allocation5 + $0xb0] sm:$0xff] %v1507
    %1559 = vst [vmem:[#allocation5 + $0xb8] sm:$0xff] %v1510
    %1560 = vst [vmem:[#allocation5 + $0xc0] sm:$0xff] %v1513
    %1561 = vst [vmem:[#allocation5 + $0xc8] sm:$0xff] %v1516
    %1562 = vst [vmem:[#allocation5 + $0xd0] sm:$0xff] %v1519
    %1563 = vst [vmem:[#allocation5 + $0xd8] sm:$0xff] %v1522
    %1564 = vst [vmem:[#allocation5 + $0xe0] sm:$0xff] %v1525
    %1565 = vst [vmem:[#allocation5 + $0xe8] sm:$0xff] %v1528
    %1566 = vst [vmem:[#allocation5 + $0xf0] sm:$0xff] %v1531
    %1567 = vst [vmem:[#allocation5 + $0xf8] sm:$0xff] %v1534
    // Predicated region
    $region42: #{tpu_custom_call.1} parent=1 // pred_check
      _
    $region43: #{tpu_custom_call.1} parent=1 // pred_check_branch
      %1569 = sbr.rel (0) target = $region45
    $region44: #{tpu_custom_call.1} parent=1 // pred_region
      %1571 = vsyncadd [#allocation4], 0
      %s1572 = sshll.u32 [#allocation5], 4
      %s1573 = int_to_ptr.vmem [resolvable:$true] %s1572
      %s1574 = sshll.u32 %s9, 4
      %s1575 = int_to_ptr.hbm [resolvable:$true] %s1574
      %1580 = dma.vmem_to_hbm [thread:$0]  %s1573, 4096, %s1575, [#allocation4], 128, 128, 8
    $region45: #{tpu_custom_call.1} parent=1 // pred_fallthru
      _
    // Predicated region
    $region46: #{tpu_custom_call.1} parent=1 // pred_check
      _
    $region47: #{tpu_custom_call.1} parent=1 // pred_check_branch
      %1582 = sbr.rel (0) target = $region49
    $region48: #{tpu_custom_call.1} parent=1 // pred_region
      %1584 = vsyncadd [#allocation7], 0
      %s1585 = sshll.u32 [#allocation6], 4
      %s1586 = int_to_ptr.vmem [resolvable:$true] %s1585
      %s1587 = sshll.u32 %s10, 4
      %s1588 = int_to_ptr.hbm [resolvable:$true] %s1587
      %1593 = dma.vmem_to_hbm [thread:$0]  %s1586, 4096, %s1588, [#allocation7], 128, 128, 8
    $region49: #{tpu_custom_call.1} parent=1 // pred_fallthru
      _
    // Predicated region
    $region50: #{tpu_custom_call.1} parent=1 // pred_check
      _
    $region51: #{tpu_custom_call.1} parent=1 // pred_check_branch
      %1595 = sbr.rel (0) target = $region53
    $region52: #{tpu_custom_call.1} parent=1 // pred_region
      %1597 = dma.done [#allocation4], 4096
    $region53: #{tpu_custom_call.1} parent=1 // pred_fallthru
      _
    // Predicated region
    $region54: #{tpu_custom_call.1} parent=1 // pred_check
      _
    $region55: #{tpu_custom_call.1} parent=1 // pred_check_branch
      %1599 = sbr.rel (0) target = $region57
    $region56: #{tpu_custom_call.1} parent=1 // pred_region
      %1601 = dma.done [#allocation7], 4096
    $region57: #{tpu_custom_call.1} parent=1 // pred_fallthru
      _
    %1602 = vsyncpa [#allocation3], 1
    %1603 = vsyncpa [#allocation4], 1
    %1604 = vsyncpa [#allocation7], 1

</llo_original>
